<compile_context>
chip_gen: v7x
topology: tpu7x:2x2x1
jax: 0.10.0
libtpu: 0.0.40
codegen_flags: <defaults>
</compile_context>

<pallas_src>
import numpy as np
import jax
import jax.numpy as jnp
from jax.experimental import pallas as pl
from jax.experimental.pallas import tpu as pltpu


# ----------------------------------------------------------------------------
# Deterministic parameter construction (faithful port of the PyTorch __init__:
# chunkifyShape / createFilterForFeature / createNextShapes).  Host-side numpy.
# ----------------------------------------------------------------------------
def chunkify_shape(shape, stride=3):
    if shape.ndim == 2:
        shape = shape[None]
    C, H, W = shape.shape
    coordinates, chunks = [], []
    for xi, x in enumerate(range(0, W, stride)):
        for yi, y in enumerate(range(0, H, stride)):
            chunk = np.zeros((C, 3, 3), dtype=np.float32)
            sub = shape[:, y:y + 3, x:x + 3]
            chunk[:, :sub.shape[1], :sub.shape[2]] = sub
            if chunk.sum() > 0.0:
                chunks.append(chunk)
                coordinates.append((xi, yi))
    return coordinates, chunks


def create_filter_for_feature(feature):
    s = float(feature.sum())
    weight = feature.copy() + (feature - 1.0) * s
    bias = -s + 1.0
    return weight.astype(np.float32), np.float32(bias)


def create_next_shapes(filter_coordinates, filter_channels, input_channels):
    next_shapes = []
    for shape_idx, coordinates in enumerate(filter_coordinates):
        max_x = max((c[0] for c in coordinates), default=0)
        max_y = max((c[1] for c in coordinates), default=0)
        ns = np.zeros((input_channels, max_y + 1, max_x + 1), dtype=np.float32)
        for chunk_idx, (cx, cy) in enumerate(coordinates):
            ch = filter_channels[shape_idx][chunk_idx]
            ns[ch, cy, cx] = 1.0
        next_shapes.append(ns)
    return next_shapes


def build_shapenet_params(in_dimensions, target_shapes):
    """Returns list of (weight (Cout,Cin,3,3), bias (Cout,)) per conv layer."""
    layers = []
    out_size = tuple(in_dimensions[1:])
    next_shapes = [np.asarray(s, dtype=np.float32) for s in target_shapes]
    shapes_separated = False
    while not shapes_separated:
        weight_bias = []
        shape_output_channels = []
        filter_coordinates = []
        for shape in next_shapes:
            coords, chunks = chunkify_shape(shape, stride=3)
            filter_coordinates.append(coords)
            out_channels = []
            for chunk in chunks:
                w, b = create_filter_for_feature(chunk)
                prev = [np.array_equal(w, wb[0]) for wb in weight_bias]
                if True in prev:
                    out_channels.append(prev.index(True))
                else:
                    out_channels.append(len(weight_bias))
                    weight_bias.append((w, b))
            shape_output_channels.append(out_channels)
        next_shapes = create_next_shapes(
            filter_coordinates, shape_output_channels, len(weight_bias))
        W = np.stack([wb[0] for wb in weight_bias]).astype(np.float32)
        b = np.array([wb[1] for wb in weight_bias], dtype=np.float32)
        layers.append((W, b))
        out_size = ((out_size[0] - 3) // 3 + 1, (out_size[1] - 3) // 3 + 1)
        total_used = sum(len(c) for c in shape_output_channels)
        shapes_separated = (len(target_shapes) == total_used)
    return layers, out_size


# ----------------------------------------------------------------------------
# Fused Pallas kernel: all conv+ReLU layers + global max-pool in one call.
# ----------------------------------------------------------------------------
def _make_fused_kernel(tn, n_layers):
    """kernel(p_ref, w1, b1, [w_l, b_l, sel_l]*, out_ref); tn items per step."""

    def kernel(*refs):
        p_ref, out_ref = refs[0], refs[-1]
        pr = refs[1:-1]
        for t in range(tn):
            # Layer 1: relu(patches @ W1 + b1) -> (R1, C1), f32 MXU accumulate.
            a = jnp.dot(p_ref[t], pr[0][...], preferred_element_type=jnp.float32)
            a = jnp.maximum(a + pr[1][...], 0.0)
            idx = 2
            for _ in range(1, n_layers):
                w_ref, b_ref, sel_ref = pr[idx], pr[idx + 1], pr[idx + 2]
                idx += 3
                acc = None
                for j in range(9):  # 3x3 taps; stride==kernel so gather is 0/1 matmul
                    g = jnp.dot(sel_ref[j], a,
                                preferred_element_type=jnp.float32)     # (R_l, C_prev)
                    term = jnp.dot(g, w_ref[j],
                                   preferred_element_type=jnp.float32)  # (R_l, C_l)
                    acc = term if acc is None else acc + term
                a = jnp.maximum(acc + b_ref[...], 0.0)
            # Global MaxPool2d + Flatten: max over spatial rows (sublane axis).
            out_ref[t] = jnp.max(a, axis=0, keepdims=True)

    return kernel


def _extract_patches(x_nchw, Ho, Wo):
    """(N,C,H,W) -> (N, Ho*Wo, 9*C) with K ordered (kh, kw, c). Done once."""
    N, C, H, W = x_nchw.shape
    x = jnp.transpose(x_nchw, (0, 2, 3, 1))
    xc = x[:, :3 * Ho, :3 * Wo, :]
    return (xc.reshape(N, Ho, 3, Wo, 3, C)
              .transpose(0, 1, 3, 2, 4, 5)
              .reshape(N, Ho * Wo, 9 * C))


def make_shapenet_forward(np_layers, in_dimensions):
    """Build a jittable forward(x_nchw) -> (N, n_classes) using one pallas_call."""
    Cin, H0, W0 = in_dimensions
    n_layers = len(np_layers)

    # Per-layer output spatial sizes (VALID conv, k=3, s=3).
    sizes = []
    h, w = H0, W0
    for _ in np_layers:
        h, w = (h - 3) // 3 + 1, (w - 3) // 3 + 1
        sizes.append((h, w))
    Ho1, Wo1 = sizes[0]
    R1, K1 = Ho1 * Wo1, 9 * Cin
    C_last = np_layers[-1][0].shape[0]

    # Layer-1 params: patch-matmul layout (9*Cin, C1), K ordered (kh, kw, cin).
    w0, b0 = np_layers[0]
    C1 = w0.shape[0]
    params = [jnp.asarray(np.transpose(w0, (2, 3, 1, 0)).reshape(K1, C1)),
              jnp.asarray(b0.reshape(1, C1))]
    param_specs = [pl.BlockSpec((K1, C1), lambda i: (0, 0)),
                   pl.BlockSpec((1, C1), lambda i: (0, 0))]

    # Layers >= 2: 9 weight slabs (C_prev, C_out), bias, and 9 constant 0/1
    # selection matrices (R_l, R_{l-1}) implementing the stride-3 3x3 gather.
    for l in range(1, n_layers):
        wgt, bias = np_layers[l]
        Cout, Cprev = wgt.shape[0], wgt.shape[1]
        Hp, Wp = sizes[l - 1]
        Ho, Wo = sizes[l]
        R, Rp = Ho * Wo, Hp * Wp
        wsl = np.transpose(wgt, (2, 3, 1, 0)).reshape(9, Cprev, Cout)
        sel = np.zeros((9, R, Rp), dtype=np.float32)
        for kh in range(3):
            for kw in range(3):
                j = kh * 3 + kw
                for ph in range(Ho):
                    for pw in range(Wo):
                        sel[j, ph * Wo + pw,
                            (3 * ph + kh) * Wp + (3 * pw + kw)] = 1.0
        params += [jnp.asarray(wsl), jnp.asarray(bias.reshape(1, Cout)),
                   jnp.asarray(sel)]
        param_specs += [pl.BlockSpec((9, Cprev, Cout), lambda i: (0, 0, 0)),
                        pl.BlockSpec((1, Cout), lambda i: (0, 0)),
                        pl.BlockSpec((9, R, Rp), lambda i: (0, 0, 0))]

    def forward(x_nchw):
        N = x_nchw.shape[0]
        p = _extract_patches(x_nchw.astype(jnp.float32), Ho1, Wo1)  # (N, R1, K1)
        # Batch tile: divides N (no pad) and keeps >= 2 grid steps for N >= 2.
        tn = 1
        for cand in (8, 4, 2):
            if N % cand == 0 and N // cand >= 2:
                tn = cand
                break
        kernel = _make_fused_kernel(tn, n_layers)
        out = pl.pallas_call(
            kernel,
            grid=(N // tn,),
            in_specs=[pl.BlockSpec((tn, R1, K1), lambda i: (i, 0, 0))] + param_specs,
            out_specs=pl.BlockSpec((tn, 1, C_last), lambda i: (i, 0, 0)),
            out_shape=jax.ShapeDtypeStruct((N, 1, C_last), jnp.float32),
            compiler_params=pltpu.CompilerParams(
                dimension_semantics=("parallel",)),
        )(p, *params)
        return out.reshape(N, C_last)

    return forward


# Pure-JAX reference of the PyTorch forward (correctness checking only).
def reference_forward(x, np_layers):
    for w, b in np_layers:
        x = jax.lax.conv_general_dilated(
            x, jnp.asarray(w), window_strides=(3, 3), padding='VALID',
            dimension_numbers=('NCHW', 'OIHW', 'NCHW'))
        x = jnp.maximum(x + jnp.asarray(b)[None, :, None, None], 0.0)
    return jnp.max(x, axis=(2, 3))


# ----------------------------------------------------------------------------
if __name__ == "__main__":
    # Target shapes (stand-in for the external `all_shapes` dict).
    target_shapes = [
        # 2x2 filled square (fits in one 3x3 chunk)
        np.array([[1., 1.],
                  [1., 1.]], dtype=np.float32),
        # two far-apart dots (spans multiple chunks -> forces a 2nd conv layer)
        np.array([[1., 0., 0., 0.],
                  [0., 0., 0., 0.],
                  [0., 0., 0., 0.],
                  [0., 0., 0., 1.]], dtype=np.float32),
        # 3x3 cross
        np.array([[0., 1., 0.],
                  [1., 1., 1.],
                  [0., 1., 0.]], dtype=np.float32),
    ]

    in_dimensions = (1, 27, 27)                     # (C, H, W)
    np_layers, _ = build_shapenet_params(in_dimensions, target_shapes)
    forward = jax.jit(make_shapenet_forward(np_layers, in_dimensions))

    key = jax.random.PRNGKey(0)
    x = (jax.random.uniform(key, (2,) + in_dimensions) < 0.2).astype(jnp.float32)

    y = jax.block_until_ready(forward(x))
    y_ref = jax.block_until_ready(reference_forward(x, np_layers))

    assert y.shape == y_ref.shape, (y.shape, y_ref.shape)
    assert y.shape == (2, np_layers[-1][1].shape[0]), y.shape
    assert np.allclose(np.asarray(y), np.asarray(y_ref), atol=1e-5), (y, y_ref)
    print("KERNEL_OK")
</pallas_src>

<mosaic_0001>
module attributes {stable_mosaic.version = 11 : i64} {
  func.func @kernel(%arg0: i32, %arg1: memref<1x81x9xf32, #tpu.memory_space<vmem>>, %arg2: memref<9x3xf32, #tpu.memory_space<vmem>>, %arg3: memref<1x3xf32, #tpu.memory_space<vmem>>, %arg4: memref<9x3x3xf32, #tpu.memory_space<vmem>>, %arg5: memref<1x3xf32, #tpu.memory_space<vmem>>, %arg6: memref<9x9x81xf32, #tpu.memory_space<vmem>>, %arg7: memref<1x1x3xf32, #tpu.memory_space<vmem>>) attributes {dimension_semantics = [#tpu.dimension_semantics<parallel>], iteration_bounds = array<i64: 2>, scalar_prefetch = 0 : i64, scratch_operands = 0 : i64, tpu.core_type = #tpu.core_type<tc>, window_params = [{transform_indices = @transform_0, window_bounds = array<i64: 1, 81, 9>}, {pipeline_mode = #tpu.pipeline_mode<synchronous>, transform_indices = @transform_1, window_bounds = array<i64: 9, 3>}, {pipeline_mode = #tpu.pipeline_mode<synchronous>, transform_indices = @transform_2, window_bounds = array<i64: 1, 3>}, {pipeline_mode = #tpu.pipeline_mode<synchronous>, transform_indices = @transform_3, window_bounds = array<i64: 9, 3, 3>}, {pipeline_mode = #tpu.pipeline_mode<synchronous>, transform_indices = @transform_4, window_bounds = array<i64: 1, 3>}, {pipeline_mode = #tpu.pipeline_mode<synchronous>, transform_indices = @transform_5, window_bounds = array<i64: 9, 9, 81>}, {transform_indices = @transform_6, window_bounds = array<i64: 1, 1, 3>}]} {
    %c0 = arith.constant 0 : index
    %c0_0 = arith.constant 0 : index
    %c0_1 = arith.constant 0 : index
    %0 = vector.load %arg1[%c0, %c0_0, %c0_1] : memref<1x81x9xf32, #tpu.memory_space<vmem>>, vector<1x81x9xf32>
    %1 = vector.shape_cast %0 : vector<1x81x9xf32> to vector<81x9xf32>
    %c0_2 = arith.constant 0 : index
    %c0_3 = arith.constant 0 : index
    %2 = vector.load %arg2[%c0_2, %c0_3] : memref<9x3xf32, #tpu.memory_space<vmem>>, vector<9x3xf32>
    %cst = arith.constant dense<0.000000e+00> : vector<81x3xf32>
    %3 = tpu.matmul %1, %2, %cst {dimension_numbers = #tpu.dot_dimension_numbers<[1], [0], [0], [1], [0, 0, 1, 1], [], []>} : vector<81x9xf32>, vector<9x3xf32>, vector<81x3xf32> -> vector<81x3xf32>
    %c0_4 = arith.constant 0 : index
    %c0_5 = arith.constant 0 : index
    %4 = vector.load %arg3[%c0_4, %c0_5] : memref<1x3xf32, #tpu.memory_space<vmem>>, vector<1x3xf32>
    %5 = vector.broadcast %4 : vector<1x3xf32> to vector<81x3xf32>
    %6 = arith.addf %3, %5 : vector<81x3xf32>
    %cst_6 = arith.constant 0.000000e+00 : f32
    %7 = vector.broadcast %cst_6 : f32 to vector<81x3xf32>
    %8 = arith.maximumf %6, %7 : vector<81x3xf32>
    %c0_7 = arith.constant 0 : index
    %c0_8 = arith.constant 0 : index
    %c0_9 = arith.constant 0 : index
    %9 = vector.load %arg6[%c0_7, %c0_8, %c0_9] : memref<9x9x81xf32, #tpu.memory_space<vmem>>, vector<1x9x81xf32>
    %10 = vector.shape_cast %9 : vector<1x9x81xf32> to vector<9x81xf32>
    %cst_10 = arith.constant dense<0.000000e+00> : vector<9x3xf32>
    %11 = tpu.matmul %10, %8, %cst_10 {dimension_numbers = #tpu.dot_dimension_numbers<[1], [0], [0], [1], [0, 0, 1, 1], [], []>} : vector<9x81xf32>, vector<81x3xf32>, vector<9x3xf32> -> vector<9x3xf32>
    %c0_11 = arith.constant 0 : index
    %c0_12 = arith.constant 0 : index
    %c0_13 = arith.constant 0 : index
    %12 = vector.load %arg4[%c0_11, %c0_12, %c0_13] : memref<9x3x3xf32, #tpu.memory_space<vmem>>, vector<1x3x3xf32>
    %13 = vector.shape_cast %12 : vector<1x3x3xf32> to vector<3x3xf32>
    %cst_14 = arith.constant dense<0.000000e+00> : vector<9x3xf32>
    %14 = tpu.matmul %11, %13, %cst_14 {dimension_numbers = #tpu.dot_dimension_numbers<[1], [0], [0], [1], [0, 0, 1, 1], [], []>} : vector<9x3xf32>, vector<3x3xf32>, vector<9x3xf32> -> vector<9x3xf32>
    %c1 = arith.constant 1 : index
    %c0_15 = arith.constant 0 : index
    %c0_16 = arith.constant 0 : index
    %15 = vector.load %arg6[%c1, %c0_15, %c0_16] : memref<9x9x81xf32, #tpu.memory_space<vmem>>, vector<1x9x81xf32>
    %16 = vector.shape_cast %15 : vector<1x9x81xf32> to vector<9x81xf32>
    %cst_17 = arith.constant dense<0.000000e+00> : vector<9x3xf32>
    %17 = tpu.matmul %16, %8, %cst_17 {dimension_numbers = #tpu.dot_dimension_numbers<[1], [0], [0], [1], [0, 0, 1, 1], [], []>} : vector<9x81xf32>, vector<81x3xf32>, vector<9x3xf32> -> vector<9x3xf32>
    %c1_18 = arith.constant 1 : index
    %c0_19 = arith.constant 0 : index
    %c0_20 = arith.constant 0 : index
    %18 = vector.load %arg4[%c1_18, %c0_19, %c0_20] : memref<9x3x3xf32, #tpu.memory_space<vmem>>, vector<1x3x3xf32>
    %19 = vector.shape_cast %18 : vector<1x3x3xf32> to vector<3x3xf32>
    %cst_21 = arith.constant dense<0.000000e+00> : vector<9x3xf32>
    %20 = tpu.matmul %17, %19, %cst_21 {dimension_numbers = #tpu.dot_dimension_numbers<[1], [0], [0], [1], [0, 0, 1, 1], [], []>} : vector<9x3xf32>, vector<3x3xf32>, vector<9x3xf32> -> vector<9x3xf32>
    %21 = arith.addf %14, %20 : vector<9x3xf32>
    %c2 = arith.constant 2 : index
    %c0_22 = arith.constant 0 : index
    %c0_23 = arith.constant 0 : index
    %22 = vector.load %arg6[%c2, %c0_22, %c0_23] : memref<9x9x81xf32, #tpu.memory_space<vmem>>, vector<1x9x81xf32>
    %23 = vector.shape_cast %22 : vector<1x9x81xf32> to vector<9x81xf32>
    %cst_24 = arith.constant dense<0.000000e+00> : vector<9x3xf32>
    %24 = tpu.matmul %23, %8, %cst_24 {dimension_numbers = #tpu.dot_dimension_numbers<[1], [0], [0], [1], [0, 0, 1, 1], [], []>} : vector<9x81xf32>, vector<81x3xf32>, vector<9x3xf32> -> vector<9x3xf32>
    %c2_25 = arith.constant 2 : index
    %c0_26 = arith.constant 0 : index
    %c0_27 = arith.constant 0 : index
    %25 = vector.load %arg4[%c2_25, %c0_26, %c0_27] : memref<9x3x3xf32, #tpu.memory_space<vmem>>, vector<1x3x3xf32>
    %26 = vector.shape_cast %25 : vector<1x3x3xf32> to vector<3x3xf32>
    %cst_28 = arith.constant dense<0.000000e+00> : vector<9x3xf32>
    %27 = tpu.matmul %24, %26, %cst_28 {dimension_numbers = #tpu.dot_dimension_numbers<[1], [0], [0], [1], [0, 0, 1, 1], [], []>} : vector<9x3xf32>, vector<3x3xf32>, vector<9x3xf32> -> vector<9x3xf32>
    %28 = arith.addf %21, %27 : vector<9x3xf32>
    %c3 = arith.constant 3 : index
    %c0_29 = arith.constant 0 : index
    %c0_30 = arith.constant 0 : index
    %29 = vector.load %arg6[%c3, %c0_29, %c0_30] : memref<9x9x81xf32, #tpu.memory_space<vmem>>, vector<1x9x81xf32>
    %30 = vector.shape_cast %29 : vector<1x9x81xf32> to vector<9x81xf32>
    %cst_31 = arith.constant dense<0.000000e+00> : vector<9x3xf32>
    %31 = tpu.matmul %30, %8, %cst_31 {dimension_numbers = #tpu.dot_dimension_numbers<[1], [0], [0], [1], [0, 0, 1, 1], [], []>} : vector<9x81xf32>, vector<81x3xf32>, vector<9x3xf32> -> vector<9x3xf32>
    %c3_32 = arith.constant 3 : index
    %c0_33 = arith.constant 0 : index
    %c0_34 = arith.constant 0 : index
    %32 = vector.load %arg4[%c3_32, %c0_33, %c0_34] : memref<9x3x3xf32, #tpu.memory_space<vmem>>, vector<1x3x3xf32>
    %33 = vector.shape_cast %32 : vector<1x3x3xf32> to vector<3x3xf32>
    %cst_35 = arith.constant dense<0.000000e+00> : vector<9x3xf32>
    %34 = tpu.matmul %31, %33, %cst_35 {dimension_numbers = #tpu.dot_dimension_numbers<[1], [0], [0], [1], [0, 0, 1, 1], [], []>} : vector<9x3xf32>, vector<3x3xf32>, vector<9x3xf32> -> vector<9x3xf32>
    %35 = arith.addf %28, %34 : vector<9x3xf32>
    %c4 = arith.constant 4 : index
    %c0_36 = arith.constant 0 : index
    %c0_37 = arith.constant 0 : index
    %36 = vector.load %arg6[%c4, %c0_36, %c0_37] : memref<9x9x81xf32, #tpu.memory_space<vmem>>, vector<1x9x81xf32>
    %37 = vector.shape_cast %36 : vector<1x9x81xf32> to vector<9x81xf32>
    %cst_38 = arith.constant dense<0.000000e+00> : vector<9x3xf32>
    %38 = tpu.matmul %37, %8, %cst_38 {dimension_numbers = #tpu.dot_dimension_numbers<[1], [0], [0], [1], [0, 0, 1, 1], [], []>} : vector<9x81xf32>, vector<81x3xf32>, vector<9x3xf32> -> vector<9x3xf32>
    %c4_39 = arith.constant 4 : index
    %c0_40 = arith.constant 0 : index
    %c0_41 = arith.constant 0 : index
    %39 = vector.load %arg4[%c4_39, %c0_40, %c0_41] : memref<9x3x3xf32, #tpu.memory_space<vmem>>, vector<1x3x3xf32>
    %40 = vector.shape_cast %39 : vector<1x3x3xf32> to vector<3x3xf32>
    %cst_42 = arith.constant dense<0.000000e+00> : vector<9x3xf32>
    %41 = tpu.matmul %38, %40, %cst_42 {dimension_numbers = #tpu.dot_dimension_numbers<[1], [0], [0], [1], [0, 0, 1, 1], [], []>} : vector<9x3xf32>, vector<3x3xf32>, vector<9x3xf32> -> vector<9x3xf32>
    %42 = arith.addf %35, %41 : vector<9x3xf32>
    %c5 = arith.constant 5 : index
    %c0_43 = arith.constant 0 : index
    %c0_44 = arith.constant 0 : index
    %43 = vector.load %arg6[%c5, %c0_43, %c0_44] : memref<9x9x81xf32, #tpu.memory_space<vmem>>, vector<1x9x81xf32>
    %44 = vector.shape_cast %43 : vector<1x9x81xf32> to vector<9x81xf32>
    %cst_45 = arith.constant dense<0.000000e+00> : vector<9x3xf32>
    %45 = tpu.matmul %44, %8, %cst_45 {dimension_numbers = #tpu.dot_dimension_numbers<[1], [0], [0], [1], [0, 0, 1, 1], [], []>} : vector<9x81xf32>, vector<81x3xf32>, vector<9x3xf32> -> vector<9x3xf32>
    %c5_46 = arith.constant 5 : index
    %c0_47 = arith.constant 0 : index
    %c0_48 = arith.constant 0 : index
    %46 = vector.load %arg4[%c5_46, %c0_47, %c0_48] : memref<9x3x3xf32, #tpu.memory_space<vmem>>, vector<1x3x3xf32>
    %47 = vector.shape_cast %46 : vector<1x3x3xf32> to vector<3x3xf32>
    %cst_49 = arith.constant dense<0.000000e+00> : vector<9x3xf32>
    %48 = tpu.matmul %45, %47, %cst_49 {dimension_numbers = #tpu.dot_dimension_numbers<[1], [0], [0], [1], [0, 0, 1, 1], [], []>} : vector<9x3xf32>, vector<3x3xf32>, vector<9x3xf32> -> vector<9x3xf32>
    %49 = arith.addf %42, %48 : vector<9x3xf32>
    %c6 = arith.constant 6 : index
    %c0_50 = arith.constant 0 : index
    %c0_51 = arith.constant 0 : index
    %50 = vector.load %arg6[%c6, %c0_50, %c0_51] : memref<9x9x81xf32, #tpu.memory_space<vmem>>, vector<1x9x81xf32>
    %51 = vector.shape_cast %50 : vector<1x9x81xf32> to vector<9x81xf32>
    %cst_52 = arith.constant dense<0.000000e+00> : vector<9x3xf32>
    %52 = tpu.matmul %51, %8, %cst_52 {dimension_numbers = #tpu.dot_dimension_numbers<[1], [0], [0], [1], [0, 0, 1, 1], [], []>} : vector<9x81xf32>, vector<81x3xf32>, vector<9x3xf32> -> vector<9x3xf32>
    %c6_53 = arith.constant 6 : index
    %c0_54 = arith.constant 0 : index
    %c0_55 = arith.constant 0 : index
    %53 = vector.load %arg4[%c6_53, %c0_54, %c0_55] : memref<9x3x3xf32, #tpu.memory_space<vmem>>, vector<1x3x3xf32>
    %54 = vector.shape_cast %53 : vector<1x3x3xf32> to vector<3x3xf32>
    %cst_56 = arith.constant dense<0.000000e+00> : vector<9x3xf32>
    %55 = tpu.matmul %52, %54, %cst_56 {dimension_numbers = #tpu.dot_dimension_numbers<[1], [0], [0], [1], [0, 0, 1, 1], [], []>} : vector<9x3xf32>, vector<3x3xf32>, vector<9x3xf32> -> vector<9x3xf32>
    %56 = arith.addf %49, %55 : vector<9x3xf32>
    %c7 = arith.constant 7 : index
    %c0_57 = arith.constant 0 : index
    %c0_58 = arith.constant 0 : index
    %57 = vector.load %arg6[%c7, %c0_57, %c0_58] : memref<9x9x81xf32, #tpu.memory_space<vmem>>, vector<1x9x81xf32>
    %58 = vector.shape_cast %57 : vector<1x9x81xf32> to vector<9x81xf32>
    %cst_59 = arith.constant dense<0.000000e+00> : vector<9x3xf32>
    %59 = tpu.matmul %58, %8, %cst_59 {dimension_numbers = #tpu.dot_dimension_numbers<[1], [0], [0], [1], [0, 0, 1, 1], [], []>} : vector<9x81xf32>, vector<81x3xf32>, vector<9x3xf32> -> vector<9x3xf32>
    %c7_60 = arith.constant 7 : index
    %c0_61 = arith.constant 0 : index
    %c0_62 = arith.constant 0 : index
    %60 = vector.load %arg4[%c7_60, %c0_61, %c0_62] : memref<9x3x3xf32, #tpu.memory_space<vmem>>, vector<1x3x3xf32>
    %61 = vector.shape_cast %60 : vector<1x3x3xf32> to vector<3x3xf32>
    %cst_63 = arith.constant dense<0.000000e+00> : vector<9x3xf32>
    %62 = tpu.matmul %59, %61, %cst_63 {dimension_numbers = #tpu.dot_dimension_numbers<[1], [0], [0], [1], [0, 0, 1, 1], [], []>} : vector<9x3xf32>, vector<3x3xf32>, vector<9x3xf32> -> vector<9x3xf32>
    %63 = arith.addf %56, %62 : vector<9x3xf32>
    %c8 = arith.constant 8 : index
    %c0_64 = arith.constant 0 : index
    %c0_65 = arith.constant 0 : index
    %64 = vector.load %arg6[%c8, %c0_64, %c0_65] : memref<9x9x81xf32, #tpu.memory_space<vmem>>, vector<1x9x81xf32>
    %65 = vector.shape_cast %64 : vector<1x9x81xf32> to vector<9x81xf32>
    %cst_66 = arith.constant dense<0.000000e+00> : vector<9x3xf32>
    %66 = tpu.matmul %65, %8, %cst_66 {dimension_numbers = #tpu.dot_dimension_numbers<[1], [0], [0], [1], [0, 0, 1, 1], [], []>} : vector<9x81xf32>, vector<81x3xf32>, vector<9x3xf32> -> vector<9x3xf32>
    %c8_67 = arith.constant 8 : index
    %c0_68 = arith.constant 0 : index
    %c0_69 = arith.constant 0 : index
    %67 = vector.load %arg4[%c8_67, %c0_68, %c0_69] : memref<9x3x3xf32, #tpu.memory_space<vmem>>, vector<1x3x3xf32>
    %68 = vector.shape_cast %67 : vector<1x3x3xf32> to vector<3x3xf32>
    %cst_70 = arith.constant dense<0.000000e+00> : vector<9x3xf32>
    %69 = tpu.matmul %66, %68, %cst_70 {dimension_numbers = #tpu.dot_dimension_numbers<[1], [0], [0], [1], [0, 0, 1, 1], [], []>} : vector<9x3xf32>, vector<3x3xf32>, vector<9x3xf32> -> vector<9x3xf32>
    %70 = arith.addf %63, %69 : vector<9x3xf32>
    %c0_71 = arith.constant 0 : index
    %c0_72 = arith.constant 0 : index
    %71 = vector.load %arg5[%c0_71, %c0_72] : memref<1x3xf32, #tpu.memory_space<vmem>>, vector<1x3xf32>
    %72 = vector.broadcast %71 : vector<1x3xf32> to vector<9x3xf32>
    %73 = arith.addf %70, %72 : vector<9x3xf32>
    %cst_73 = arith.constant 0.000000e+00 : f32
    %74 = vector.broadcast %cst_73 : f32 to vector<9x3xf32>
    %75 = arith.maximumf %73, %74 : vector<9x3xf32>
    %cst_74 = arith.constant dense<0xFF800000> : vector<3xf32>
    %76 = vector.multi_reduction <maximumf>, %75, %cst_74 [0] : vector<9x3xf32> to vector<3xf32>
    %77 = vector.shape_cast %76 : vector<3xf32> to vector<1x3xf32>
    %c0_75 = arith.constant 0 : index
    %c0_76 = arith.constant 0 : index
    %c0_77 = arith.constant 0 : index
    %78 = vector.load %arg7[%c0_75, %c0_76, %c0_77] : memref<1x1x3xf32, #tpu.memory_space<vmem>>, vector<1x1x3xf32>
    %79 = vector.shape_cast %78 : vector<1x1x3xf32> to vector<1x3xf32>
    %80 = vector.shape_cast %77 : vector<1x3xf32> to vector<1x1x3xf32>
    tpu.vector_store %arg7[%c0_75, %c0_76, %c0_77], %80 {strides = array<i32>} : memref<1x1x3xf32, #tpu.memory_space<vmem>>, vector<1x1x3xf32>,
    return
  }
  func.func @transform_0(%arg0: i32) -> (i32, i32, i32) {
    %c0_i32 = arith.constant 0 : i32
    %c0_i32_0 = arith.constant 0 : i32
    %c0_i32_1 = arith.constant 0 : i32
    return %arg0, %c0_i32, %c0_i32_0 : i32, i32, i32
  }
  func.func @transform_1(%arg0: i32) -> (i32, i32) {
    %c0_i32 = arith.constant 0 : i32
    %c0_i32_0 = arith.constant 0 : i32
    %c0_i32_1 = arith.constant 0 : i32
    return %c0_i32, %c0_i32_0 : i32, i32
  }
  func.func @transform_2(%arg0: i32) -> (i32, i32) {
    %c0_i32 = arith.constant 0 : i32
    %c0_i32_0 = arith.constant 0 : i32
    %c0_i32_1 = arith.constant 0 : i32
    return %c0_i32, %c0_i32_0 : i32, i32
  }
  func.func @transform_3(%arg0: i32) -> (i32, i32, i32) {
    %c0_i32 = arith.constant 0 : i32
    %c0_i32_0 = arith.constant 0 : i32
    %c0_i32_1 = arith.constant 0 : i32
    %c0_i32_2 = arith.constant 0 : i32
    return %c0_i32, %c0_i32_0, %c0_i32_1 : i32, i32, i32
  }
  func.func @transform_4(%arg0: i32) -> (i32, i32) {
    %c0_i32 = arith.constant 0 : i32
    %c0_i32_0 = arith.constant 0 : i32
    %c0_i32_1 = arith.constant 0 : i32
    return %c0_i32, %c0_i32_0 : i32, i32
  }
  func.func @transform_5(%arg0: i32) -> (i32, i32, i32) {
    %c0_i32 = arith.constant 0 : i32
    %c0_i32_0 = arith.constant 0 : i32
    %c0_i32_1 = arith.constant 0 : i32
    %c0_i32_2 = arith.constant 0 : i32
    return %c0_i32, %c0_i32_0, %c0_i32_1 : i32, i32, i32
  }
  func.func @transform_6(%arg0: i32) -> (i32, i32, i32) {
    %c0_i32 = arith.constant 0 : i32
    %c0_i32_0 = arith.constant 0 : i32
    %c0_i32_1 = arith.constant 0 : i32
    return %arg0, %c0_i32, %c0_i32_0 : i32, i32, i32
  }
}

</mosaic_0001>

<llo_original>
// kernel: forward.1
$region0: #{forward.1}
  #allocation0 [shape = 'u32[]', space=smem, size = 0x4, offset = 0x4, fixed_abs, tag = 'smem constant byte address 0x4 - core index']
  #allocation1 [shape = 'u32[144,128]{1,0:T(1,128)}', space=vmem, size = 0x12000, scoped, tag = 'internal scratch']
  %s0 = inlined_call_operand.vmem [shape: f32[2,81,9], index: 0, kind: input, shape index: {}]
  %s1 = inlined_call_operand.vmem [shape: f32[9,3], index: 1, kind: input, shape index: {}]
  %s2 = inlined_call_operand.vmem [shape: f32[1,3], index: 2, kind: input, shape index: {}]
  %s3 = inlined_call_operand.vmem [shape: f32[9,3,3], index: 3, kind: input, shape index: {}]
  %s4 = inlined_call_operand.vmem [shape: f32[1,3], index: 4, kind: input, shape index: {}]
  %s5 = inlined_call_operand.vmem [shape: f32[9,9,81], index: 5, kind: input, shape index: {}]
  %s6 = inlined_call_operand.hbm [shape: f32[2,1,3], index: 6, kind: output, shape index: {}]
  %s7 = sld [smem:[#allocation0]]
  $region57: #{forward.1} parent=0
    _
  %s9 = ssub.s32 1, %s7
  %s10 = scalar_select 0, %s9, %s7
  $region1: #{forward.1} parent=0
    #allocation2 [shape = 'u8[1024]{0}', space=vmem, size = 0x400, scoped, tag = 'output window, operand 0']
    #allocation3 [shape = 's32[2]{0}', space=sflag, size = 0x8, scoped, tag = 'scoped memory for forward.1']
    %11 = vsyncpa [#allocation3], 0
    %s12 = scalar_lea.sflag [#allocation3], 1
    %13 = vsyncpa %s12, 0
    loop: start=0, step=1, limit=4
    $region2: #{forward.1} parent=1 // loop_pre_header
      _
    $region3: #{forward.1} parent=1 // loop_header
      %s15 = sphi 0, %s19
      %p16 = scmp.ge.s32.totalorder %s15, 4
      %s25 = sphi 0, %s27
      %s28 = sphi 0, %s25
      %s29 = sphi 0, %s28
      %s45 = sphi 0, %s29
      %s49 = sphi 0, %s49
      %s51 = sphi 0, %s49
      %s52 = sphi 0, %s51
      %s66 = sphi 0, %s52
      %s70 = sphi 0, %s70
      %s72 = sphi 0, %s70
      %s73 = sphi 0, %s72
      %s87 = sphi 0, %s73
      %s91 = sphi 0, %s91
      %s93 = sphi 0, %s91
      %s94 = sphi 0, %s93
      %s108 = sphi 0, %s94
      %s112 = sphi 0, %s112
      %s114 = sphi 0, %s112
      %s115 = sphi 0, %s114
      %s129 = sphi 0, %s115
      %s133 = sphi 0, %s133
      %s135 = sphi 0, %s133
      %s136 = sphi 0, %s135
      %s150 = sphi 0, %s136
      %s156 = sphi 0, %s158
      %s159 = sphi 0, %s156
      %s160 = sphi 0, %s159
      %s176 = sphi 0, %s160
    $region4: #{forward.1} parent=1 // loop_header_branch
      %18 = sbr.rel (%p16) target = $region8
    $region5: #{forward.1} parent=1 // loop_body
      %s20 = ssub.s32 %s15, 1
      %s21 = ssub.s32 %s15, 2
      %s22 = sadd.s32 %s15, 1
      %s23 = ssub.s32 %s15, %s22
      %p24 = scmp.eq.s32.totalorder %s23, 0
      %s26 = sadd.s32 %s25, 1
      %s27 = scalar_select %p24, %s25, %s26
      %p30 = pneg %p24
      %p31 = scmp.eq.s32.totalorder %s15, 1
      %p32 = por %p30, %p31
      %p33 = scmp.ne.s32.totalorder %s25, %s28
      %p34 = scmp.eq.s32.totalorder %s15, 0
      %p35 = por %p33, %p34
      %p36 = scmp.ne.s32.totalorder %s25, %s28
      %p37 = scmp.eq.s32.totalorder %s20, 1
      %p38 = por %p36, %p37
      %p39 = scmp.ne.s32.totalorder %s28, %s29
      %p40 = scmp.eq.s32.totalorder %s20, 0
      %p41 = por %p39, %p40
      %p42 = scmp.ne.s32.totalorder %s28, %s29
      %p43 = scmp.eq.s32.totalorder %s21, 1
      %p44 = por %p42, %p43
      %p46 = scmp.ne.s32.totalorder %s29, %s45
      %p47 = scmp.eq.s32.totalorder %s21, 0
      %p48 = por %p46, %p47
      %s50 = sadd.s32 %s49, 1
      %p53 = scmp.eq.s32.totalorder %s15, 1
      %p54 = scmp.ne.s32.totalorder %s49, %s51
      %p55 = scmp.eq.s32.totalorder %s15, 0
      %p56 = por %p54, %p55
      %p57 = scmp.ne.s32.totalorder %s49, %s51
      %p58 = scmp.eq.s32.totalorder %s20, 1
      %p59 = por %p57, %p58
      %p60 = scmp.ne.s32.totalorder %s51, %s52
      %p61 = scmp.eq.s32.totalorder %s20, 0
      %p62 = por %p60, %p61
      %p63 = scmp.ne.s32.totalorder %s51, %s52
      %p64 = scmp.eq.s32.totalorder %s21, 1
      %p65 = por %p63, %p64
      %p67 = scmp.ne.s32.totalorder %s52, %s66
      %p68 = scmp.eq.s32.totalorder %s21, 0
      %p69 = por %p67, %p68
      %s71 = sadd.s32 %s70, 1
      %p74 = scmp.eq.s32.totalorder %s15, 1
      %p75 = scmp.ne.s32.totalorder %s70, %s72
      %p76 = scmp.eq.s32.totalorder %s15, 0
      %p77 = por %p75, %p76
      %p78 = scmp.ne.s32.totalorder %s70, %s72
      %p79 = scmp.eq.s32.totalorder %s20, 1
      %p80 = por %p78, %p79
      %p81 = scmp.ne.s32.totalorder %s72, %s73
      %p82 = scmp.eq.s32.totalorder %s20, 0
      %p83 = por %p81, %p82
      %p84 = scmp.ne.s32.totalorder %s72, %s73
      %p85 = scmp.eq.s32.totalorder %s21, 1
      %p86 = por %p84, %p85
      %p88 = scmp.ne.s32.totalorder %s73, %s87
      %p89 = scmp.eq.s32.totalorder %s21, 0
      %p90 = por %p88, %p89
      %s92 = sadd.s32 %s91, 1
      %p95 = scmp.eq.s32.totalorder %s15, 1
      %p96 = scmp.ne.s32.totalorder %s91, %s93
      %p97 = scmp.eq.s32.totalorder %s15, 0
      %p98 = por %p96, %p97
      %p99 = scmp.ne.s32.totalorder %s91, %s93
      %p100 = scmp.eq.s32.totalorder %s20, 1
      %p101 = por %p99, %p100
      %p102 = scmp.ne.s32.totalorder %s93, %s94
      %p103 = scmp.eq.s32.totalorder %s20, 0
      %p104 = por %p102, %p103
      %p105 = scmp.ne.s32.totalorder %s93, %s94
      %p106 = scmp.eq.s32.totalorder %s21, 1
      %p107 = por %p105, %p106
      %p109 = scmp.ne.s32.totalorder %s94, %s108
      %p110 = scmp.eq.s32.totalorder %s21, 0
      %p111 = por %p109, %p110
      %s113 = sadd.s32 %s112, 1
      %p116 = scmp.eq.s32.totalorder %s15, 1
      %p117 = scmp.ne.s32.totalorder %s112, %s114
      %p118 = scmp.eq.s32.totalorder %s15, 0
      %p119 = por %p117, %p118
      %p120 = scmp.ne.s32.totalorder %s112, %s114
      %p121 = scmp.eq.s32.totalorder %s20, 1
      %p122 = por %p120, %p121
      %p123 = scmp.ne.s32.totalorder %s114, %s115
      %p124 = scmp.eq.s32.totalorder %s20, 0
      %p125 = por %p123, %p124
      %p126 = scmp.ne.s32.totalorder %s114, %s115
      %p127 = scmp.eq.s32.totalorder %s21, 1
      %p128 = por %p126, %p127
      %p130 = scmp.ne.s32.totalorder %s115, %s129
      %p131 = scmp.eq.s32.totalorder %s21, 0
      %p132 = por %p130, %p131
      %s134 = sadd.s32 %s133, 1
      %p137 = scmp.eq.s32.totalorder %s15, 1
      %p138 = scmp.ne.s32.totalorder %s133, %s135
      %p139 = scmp.eq.s32.totalorder %s15, 0
      %p140 = por %p138, %p139
      %p141 = scmp.ne.s32.totalorder %s133, %s135
      %p142 = scmp.eq.s32.totalorder %s20, 1
      %p143 = por %p141, %p142
      %p144 = scmp.ne.s32.totalorder %s135, %s136
      %p145 = scmp.eq.s32.totalorder %s20, 0
      %p146 = por %p144, %p145
      %p147 = scmp.ne.s32.totalorder %s135, %s136
      %p148 = scmp.eq.s32.totalorder %s21, 1
      %p149 = por %p147, %p148
      %p151 = scmp.ne.s32.totalorder %s136, %s150
      %p152 = scmp.eq.s32.totalorder %s21, 0
      %p153 = por %p151, %p152
      %s154 = ssub.s32 %s15, %s22
      %p155 = scmp.eq.s32.totalorder %s154, 0
      %s157 = sadd.s32 %s156, 1
      %s158 = scalar_select %p155, %s156, %s157
      %p161 = pneg %p155
      %p162 = scmp.eq.s32.totalorder %s15, 1
      %p163 = por %p161, %p162
      %p164 = scmp.ne.s32.totalorder %s156, %s159
      %p165 = scmp.eq.s32.totalorder %s15, 0
      %p166 = por %p164, %p165
      %p167 = scmp.ne.s32.totalorder %s156, %s159
      %p168 = scmp.eq.s32.totalorder %s20, 1
      %p169 = por %p167, %p168
      %p170 = scmp.ne.s32.totalorder %s159, %s160
      %p171 = scmp.eq.s32.totalorder %s20, 0
      %p172 = por %p170, %p171
      %p173 = scmp.ne.s32.totalorder %s159, %s160
      %p174 = scmp.eq.s32.totalorder %s21, 1
      %p175 = por %p173, %p174
      %p177 = scmp.ne.s32.totalorder %s160, %s176
      %p178 = scmp.eq.s32.totalorder %s21, 0
      %p179 = por %p177, %p178
      %p180 = scmp.le.s32.totalorder 1, %s15
      %p181 = scmp.lt.s32.totalorder %s15, 3
      %p182 = pnand %p180, %p181
      %p183 = pneg %p182
      // Predicated region
      $region9: #{forward.1} parent=5 // pred_check
        _
      $region10: #{forward.1} parent=5 // pred_check_branch
        %185 = sbr.rel (%p182) target = $region12
      $region11: #{forward.1} parent=5 // pred_region
        %s186 = ssub.s32 %s15, 1
        // Predicated region
        $region13: #{forward.1} parent=11 // pred_check
          %p187 = pneg %p62
        $region14: #{forward.1} parent=11 // pred_check_branch
          %189 = sbr.rel (%p187) target = $region16
        $region15: #{forward.1} parent=11 // pred_region
          _
        $region16: #{forward.1} parent=11 // pred_fallthru
          _
        // Predicated region
        $region17: #{forward.1} parent=11 // pred_check
          %p190 = pneg %p83
        $region18: #{forward.1} parent=11 // pred_check_branch
          %192 = sbr.rel (%p190) target = $region20
        $region19: #{forward.1} parent=11 // pred_region
          _
        $region20: #{forward.1} parent=11 // pred_fallthru
          _
        // Predicated region
        $region21: #{forward.1} parent=11 // pred_check
          %p193 = pneg %p104
        $region22: #{forward.1} parent=11 // pred_check_branch
          %195 = sbr.rel (%p193) target = $region24
        $region23: #{forward.1} parent=11 // pred_region
          _
        $region24: #{forward.1} parent=11 // pred_fallthru
          _
        // Predicated region
        $region25: #{forward.1} parent=11 // pred_check
          %p196 = pneg %p125
        $region26: #{forward.1} parent=11 // pred_check_branch
          %198 = sbr.rel (%p196) target = $region28
        $region27: #{forward.1} parent=11 // pred_region
          _
        $region28: #{forward.1} parent=11 // pred_fallthru
          _
        // Predicated region
        $region29: #{forward.1} parent=11 // pred_check
          %p199 = pneg %p146
        $region30: #{forward.1} parent=11 // pred_check_branch
          %201 = sbr.rel (%p199) target = $region32
        $region31: #{forward.1} parent=11 // pred_region
          _
        $region32: #{forward.1} parent=11 // pred_fallthru
          _
      $region12: #{forward.1} parent=5 // pred_fallthru
        _
      %p202 = scmp.lt.s32.totalorder %s15, 2
      // Predicated region
      $region33: #{forward.1} parent=5 // pred_check
        %p203 = pneg %p202
      $region34: #{forward.1} parent=5 // pred_check_branch
        %205 = sbr.rel (%p203) target = $region36
      $region35: #{forward.1} parent=5 // pred_region
        // Predicated region
        $region37: #{forward.1} parent=35 // pred_check
          %p206 = pneg %p35
        $region38: #{forward.1} parent=35 // pred_check_branch
          %208 = sbr.rel (%p206) target = $region40
        $region39: #{forward.1} parent=35 // pred_region
          %p209 = scmp.lt.s32.totalorder %s15, 1
          %s210 = scalar_select %p209, %s15, 1
          %s211 = smul.addr %s210, 11
          %s212 = smul.addr %s211, 8
          %s213 = scalar_lea.vmem %s0, %s212
        $region40: #{forward.1} parent=35 // pred_fallthru
          _
      $region36: #{forward.1} parent=5 // pred_fallthru
        _
      %p214 = scmp.le.s32.totalorder 1, %s15
      %p215 = scmp.lt.s32.totalorder %s15, 3
      %p216 = pnand %p214, %p215
      %p217 = pneg %p216
      // Predicated region
      $region41: #{forward.1} parent=5 // pred_check
        _
      $region42: #{forward.1} parent=5 // pred_check_branch
        %219 = sbr.rel (%p216) target = $region44
      $region43: #{forward.1} parent=5 // pred_region
        %s220 = ssub.s32 %s15, 1
        %p221 = scmp.lt.s32.totalorder %s20, 1
        %s222 = scalar_select %p221, %s20, 1
        %s223 = smul.addr %s222, 11
        %s224 = smul.addr %s223, 8
        %s225 = scalar_lea.vmem %s0, %s224
        %p226 = pneg %p41
        %p227 = pneg %p38
        %p228 = pneg %p62
        %p229 = pneg %p59
        %p230 = pneg %p83
        %p231 = pneg %p80
        %p232 = pneg %p104
        %p233 = pneg %p101
        %p234 = pneg %p125
        %p235 = pneg %p122
        %p236 = pneg %p146
        %p237 = pneg %p143
        %p238 = pneg %p172
        %p239 = pneg %p169
        %s240 = sand.u32 %s159, 1
        %s241 = scalar_lea.sflag [#allocation3], %s240
        %s242 = sand.u32 %s159, 1
        %s243 = scalar_lea.vmem [#allocation2], %s242
        %p244 = scmp.lt.s32.totalorder %s20, 1
        %s245 = scalar_select %p244, %s20, 1
        %s246 = smul.addr %s245, 11
        %s247 = smul.addr %s246, 8
        %s248 = scalar_lea.vmem %s0, %s247
        %v249 = vld [vmem:[%s248] sm:$0xff]
        %v250 = vld [vmem:[%s248 + $0x8] sm:$0xff]
        %v251 = vld [vmem:[%s248 + $0x10] sm:$0xff]
        %v252 = vld [vmem:[%s248 + $0x18] sm:$0xff]
        %v253 = vld [vmem:[%s248 + $0x20] sm:$0xff]
        %v254 = vld [vmem:[%s248 + $0x28] sm:$0xff]
        %v255 = vld [vmem:[%s248 + $0x30] sm:$0xff]
        %v256 = vld [vmem:[%s248 + $0x38] sm:$0xff]
        %v257 = vld [vmem:[%s248 + $0x40] sm:$0xff]
        %v258 = vld [vmem:[%s248 + $0x48] sm:$0xff]
        %v259 = vld [vmem:[%s248 + $0x50] sm:$0x1]
        %v260 = vld [vmem:[%s1] sm:$0xff]
        %v261 = vld [vmem:[%s1 + $0x8] sm:$0x1]
        %v262 = vld [vmem:[%s2] sm:$0x1]
        %v264 = vlaneseq
        %v265 = vshrl.u32 %v264, 7
        %v266 = vsub.s32 0, %v265
        %v267 = vrot.slane %v262, %v266
        %vm269 = vcmask 72704
        %v271 = vsel %vm269, %v249, 0
        %v274 = vsel %vm269, %v250, 0
        %v277 = vsel %vm269, %v251, 0
        %v280 = vsel %vm269, %v252, 0
        %v283 = vsel %vm269, %v253, 0
        %v286 = vsel %vm269, %v254, 0
        %v289 = vsel %vm269, %v255, 0
        %v292 = vsel %vm269, %v256, 0
        %v295 = vsel %vm269, %v257, 0
        %v298 = vsel %vm269, %v258, 0
        %v301 = vsel %vm269, %v259, 0
        %vm303 = vcmask 1040384
        %v305 = vsel %vm303, %v261, 0
        %307 = vmatprep.subr.mxu0 0.0
        %308 = vmatpush1.msra.mxu0 %v260
        %309 = vmatprep.subr.mxu0 0.0
        %310 = vmatpush1.msra.mxu0 %v305
        %311 = vmatprep.subr.mxu0 0.0
        %312 = vmatpush1.msra.mxu0 0.0
        %313 = vmatprep.subr.mxu0 0.0
        %314 = vmatpush1.msra.mxu0 0.0
        %315 = vmatprep.subr.mxu0 0.0
        %316 = vmatpush1.msra.mxu0 0.0
        %317 = vmatprep.subr.mxu0 0.0
        %318 = vmatpush1.msra.mxu0 0.0
        %319 = vmatprep.subr.mxu0 0.0
        %320 = vmatpush1.msra.mxu0 0.0
        %321 = vmatprep.subr.mxu0 0.0
        %322 = vmatpush1.msra.mxu0 0.0
        %323 = vmatprep.subr.mxu0 0.0
        %324 = vmatpush1.msra.mxu0 0.0
        %325 = vmatprep.subr.mxu0 0.0
        %326 = vmatpush1.msra.mxu0 0.0
        %327 = vmatprep.subr.mxu0 0.0
        %328 = vmatpush1.msra.mxu0 0.0
        %329 = vmatprep.subr.mxu0 0.0
        %330 = vmatpush1.msra.mxu0 0.0
        %331 = vmatprep.subr.mxu0 0.0
        %332 = vmatpush1.msra.mxu0 0.0
        %333 = vmatprep.subr.mxu0 0.0
        %334 = vmatpush1.msra.mxu0 0.0
        %335 = vmatprep.subr.mxu0 0.0
        %336 = vmatpush1.msra.mxu0 0.0
        %337 = vmatprep.subr.mxu0 0.0
        %338 = vmatpush1.msra.mxu0 0.0
        %339 = vmatprep.subr.mxu0 0.0
        %340 = vmatpush1.msra.mxu0 0.0
        %341 = vmatprep.subr.mxu0 0.0
        %342 = vmatpush1.msra.mxu0 0.0
        %343 = vmatprep.subr.mxu0 0.0
        %344 = vmatpush1.msra.mxu0 0.0
        %345 = vmatprep.subr.mxu0 0.0
        %346 = vmatpush1.msra.mxu0 0.0
        %347 = vmatprep.subr.mxu0 0.0
        %348 = vmatpush1.msra.mxu0 0.0
        %349 = vmatprep.subr.mxu0 0.0
        %350 = vmatpush1.msra.mxu0 0.0
        %351 = vmatprep.subr.mxu0 0.0
        %352 = vmatpush1.msra.mxu0 0.0
        %353 = vmatprep.subr.mxu0 0.0
        %354 = vmatpush1.msra.mxu0 0.0
        %355 = vmatprep.subr.mxu0 0.0
        %356 = vmatpush1.msra.mxu0 0.0
        %357 = vmatprep.subr.mxu0 0.0
        %358 = vmatpush1.msra.mxu0 0.0
        %359 = vmatprep.subr.mxu0 0.0
        %360 = vmatpush1.msra.mxu0 0.0
        %361 = vmatprep.subr.mxu0 0.0
        %362 = vmatpush1.msra.mxu0 0.0
        %363 = vmatprep.subr.mxu0 0.0
        %364 = vmatpush1.msra.mxu0 0.0
        %365 = vmatprep.subr.mxu0 0.0
        %366 = vmatpush1.msra.mxu0 0.0
        %367 = vmatprep.subr.mxu0 0.0
        %368 = vmatpush1.msra.mxu0 0.0
        %369 = vmatprep.subr.mxu0 0.0
        %370 = vmatpush1.msra.mxu0 0.0
        %371 = vmatprep.mubr.f32.mxu0 0.0
        %372 = vmatmul.mubr.f32.gmra.mrb[0].mxu0 %v271
        %v373 = vpop.f32.mrb[0].mxu0
        %v374 = vadd.f32 %v267, %v373
        %v375 = vpop.f32.mrb[0].mxu0
        %376 = vmatprep.mubr.f32.mxu0 0.0
        %377 = vmatmul.mubr.f32.gmra.mrb[0].mxu0 %v274
        %v378 = vpop.f32.mrb[0].mxu0
        %v379 = vadd.f32 %v267, %v378
        %v380 = vpop.f32.mrb[0].mxu0
        %381 = vmatprep.mubr.f32.mxu0 0.0
        %382 = vmatmul.mubr.f32.gmra.mrb[0].mxu0 %v277
        %v383 = vpop.f32.mrb[0].mxu0
        %v384 = vadd.f32 %v267, %v383
        %v385 = vpop.f32.mrb[0].mxu0
        %386 = vmatprep.mubr.f32.mxu0 0.0
        %387 = vmatmul.mubr.f32.gmra.mrb[0].mxu0 %v280
        %v388 = vpop.f32.mrb[0].mxu0
        %v389 = vadd.f32 %v267, %v388
        %v390 = vpop.f32.mrb[0].mxu0
        %391 = vmatprep.mubr.f32.mxu0 0.0
        %392 = vmatmul.mubr.f32.gmra.mrb[0].mxu0 %v283
        %v393 = vpop.f32.mrb[0].mxu0
        %v394 = vadd.f32 %v267, %v393
        %v395 = vpop.f32.mrb[0].mxu0
        %396 = vmatprep.mubr.f32.mxu0 0.0
        %397 = vmatmul.mubr.f32.gmra.mrb[0].mxu0 %v286
        %v398 = vpop.f32.mrb[0].mxu0
        %v399 = vadd.f32 %v267, %v398
        %v400 = vpop.f32.mrb[0].mxu0
        %401 = vmatprep.mubr.f32.mxu0 0.0
        %402 = vmatmul.mubr.f32.gmra.mrb[0].mxu0 %v289
        %v403 = vpop.f32.mrb[0].mxu0
        %v404 = vadd.f32 %v267, %v403
        %v405 = vpop.f32.mrb[0].mxu0
        %406 = vmatprep.mubr.f32.mxu0 0.0
        %407 = vmatmul.mubr.f32.gmra.mrb[0].mxu0 %v292
        %v408 = vpop.f32.mrb[0].mxu0
        %v409 = vadd.f32 %v267, %v408
        %v410 = vpop.f32.mrb[0].mxu0
        %411 = vmatprep.mubr.f32.mxu0 0.0
        %412 = vmatmul.mubr.f32.gmra.mrb[0].mxu0 %v295
        %v413 = vpop.f32.mrb[0].mxu0
        %v414 = vadd.f32 %v267, %v413
        %v415 = vpop.f32.mrb[0].mxu0
        %416 = vmatprep.mubr.f32.mxu0 0.0
        %417 = vmatmul.mubr.f32.gmra.mrb[0].mxu0 %v298
        %v418 = vpop.f32.mrb[0].mxu0
        %v419 = vadd.f32 %v267, %v418
        %v420 = vpop.f32.mrb[0].mxu0
        %421 = vmatprep.mubr.f32.mxu0 0.0
        %422 = vmatmul.mubr.f32.gmra.mrb[0].mxu0 %v301
        %v423 = vpop.f32.mrb[0].mxu0
        %v424 = vadd.f32 %v267, %v423
        %v425 = vpop.f32.mrb[0].mxu0
        %426 = vdwg.mxu0
        %v427 = vmax.f32 %v374, 0.0
        %v428 = vmax.f32 %v379, 0.0
        %v429 = vmax.f32 %v384, 0.0
        %v430 = vmax.f32 %v389, 0.0
        %v431 = vmax.f32 %v394, 0.0
        %v432 = vmax.f32 %v399, 0.0
        %v433 = vmax.f32 %v404, 0.0
        %v434 = vmax.f32 %v409, 0.0
        %v435 = vmax.f32 %v414, 0.0
        %v436 = vmax.f32 %v419, 0.0
        %v437 = vmax.f32 %v424, 0.0
        %v438 = vld [vmem:[%s5] sm:$0xff]
        %v439 = vld [vmem:[%s5 + $0x8] sm:$0x1]
        %vm440 = vcmask 662528
        %v442 = vsel %vm440, %v438, 0
        %v445 = vsel %vm440, %v439, 0
        %v448 = vsel %vm303, %v437, 0
        %450 = vmatprep.subr.mxu0 0.0
        %451 = vmatpush1.msra.mxu0 %v427
        %452 = vmatprep.subr.mxu0 0.0
        %453 = vmatpush1.msra.mxu0 %v428
        %454 = vmatprep.subr.mxu0 0.0
        %455 = vmatpush1.msra.mxu0 %v429
        %456 = vmatprep.subr.mxu0 0.0
        %457 = vmatpush1.msra.mxu0 %v430
        %458 = vmatprep.subr.mxu0 0.0
        %459 = vmatpush1.msra.mxu0 %v431
        %460 = vmatprep.subr.mxu0 0.0
        %461 = vmatpush1.msra.mxu0 %v432
        %462 = vmatprep.subr.mxu0 0.0
        %463 = vmatpush1.msra.mxu0 %v433
        %464 = vmatprep.subr.mxu0 0.0
        %465 = vmatpush1.msra.mxu0 %v434
        %466 = vmatprep.subr.mxu0 0.0
        %467 = vmatpush1.msra.mxu0 %v435
        %468 = vmatprep.subr.mxu0 0.0
        %469 = vmatpush1.msra.mxu0 %v436
        %470 = vmatprep.subr.mxu0 0.0
        %471 = vmatpush1.msra.mxu0 %v448
        %472 = vmatprep.subr.mxu0 0.0
        %473 = vmatpush1.msra.mxu0 0.0
        %474 = vmatprep.subr.mxu0 0.0
        %475 = vmatpush1.msra.mxu0 0.0
        %476 = vmatprep.subr.mxu0 0.0
        %477 = vmatpush1.msra.mxu0 0.0
        %478 = vmatprep.subr.mxu0 0.0
        %479 = vmatpush1.msra.mxu0 0.0
        %480 = vmatprep.subr.mxu0 0.0
        %481 = vmatpush1.msra.mxu0 0.0
        %482 = vmatprep.subr.mxu0 0.0
        %483 = vmatpush1.msra.mxu0 0.0
        %484 = vmatprep.subr.mxu0 0.0
        %485 = vmatpush1.msra.mxu0 0.0
        %486 = vmatprep.subr.mxu0 0.0
        %487 = vmatpush1.msra.mxu0 0.0
        %488 = vmatprep.subr.mxu0 0.0
        %489 = vmatpush1.msra.mxu0 0.0
        %490 = vmatprep.subr.mxu0 0.0
        %491 = vmatpush1.msra.mxu0 0.0
        %492 = vmatprep.subr.mxu0 0.0
        %493 = vmatpush1.msra.mxu0 0.0
        %494 = vmatprep.subr.mxu0 0.0
        %495 = vmatpush1.msra.mxu0 0.0
        %496 = vmatprep.subr.mxu0 0.0
        %497 = vmatpush1.msra.mxu0 0.0
        %498 = vmatprep.subr.mxu0 0.0
        %499 = vmatpush1.msra.mxu0 0.0
        %500 = vmatprep.subr.mxu0 0.0
        %501 = vmatpush1.msra.mxu0 0.0
        %502 = vmatprep.subr.mxu0 0.0
        %503 = vmatpush1.msra.mxu0 0.0
        %504 = vmatprep.subr.mxu0 0.0
        %505 = vmatpush1.msra.mxu0 0.0
        %506 = vmatprep.subr.mxu0 0.0
        %507 = vmatpush1.msra.mxu0 0.0
        %508 = vmatprep.subr.mxu0 0.0
        %509 = vmatpush1.msra.mxu0 0.0
        %510 = vmatprep.subr.mxu0 0.0
        %511 = vmatpush1.msra.mxu0 0.0
        %512 = vmatprep.subr.mxu0 0.0
        %513 = vmatpush1.msra.mxu0 0.0
        %514 = vmatprep.mubr.f32.mxu0 0.0
        %515 = vmatmul.mubr.f32.gmra.mrb[0].mxu0 %v442
        %v516 = vpop.f32.mrb[0].mxu0
        %v517 = vadd.f32 0.0, %v516
        %v518 = vpop.f32.mrb[0].mxu0
        %519 = vmatprep.mubr.f32.mxu0 0.0
        %520 = vmatmul.mubr.f32.gmra.mrb[0].mxu0 %v445
        %v521 = vpop.f32.mrb[0].mxu0
        %v522 = vadd.f32 0.0, %v521
        %v523 = vpop.f32.mrb[0].mxu0
        %524 = vdwg.mxu0
        %v525 = vld [vmem:[%s3] sm:$0x7]
        %s526 = scalar_lea.vmem %s5, 16
        %v527 = vld [vmem:[%s526] sm:$0xff]
        %v528 = vld [vmem:[%s526 + $0x8] sm:$0x1]
        %v530 = vsel %vm440, %v527, 0
        %v533 = vsel %vm440, %v528, 0
        %535 = vmatprep.subr.mxu0 0.0
        %536 = vmatpush1.msra.mxu0 %v427
        %537 = vmatprep.subr.mxu0 0.0
        %538 = vmatpush1.msra.mxu0 %v428
        %539 = vmatprep.subr.mxu0 0.0
        %540 = vmatpush1.msra.mxu0 %v429
        %541 = vmatprep.subr.mxu0 0.0
        %542 = vmatpush1.msra.mxu0 %v430
        %543 = vmatprep.subr.mxu0 0.0
        %544 = vmatpush1.msra.mxu0 %v431
        %545 = vmatprep.subr.mxu0 0.0
        %546 = vmatpush1.msra.mxu0 %v432
        %547 = vmatprep.subr.mxu0 0.0
        %548 = vmatpush1.msra.mxu0 %v433
        %549 = vmatprep.subr.mxu0 0.0
        %550 = vmatpush1.msra.mxu0 %v434
        %551 = vmatprep.subr.mxu0 0.0
        %552 = vmatpush1.msra.mxu0 %v435
        %553 = vmatprep.subr.mxu0 0.0
        %554 = vmatpush1.msra.mxu0 %v436
        %555 = vmatprep.subr.mxu0 0.0
        %556 = vmatpush1.msra.mxu0 %v448
        %557 = vmatprep.subr.mxu0 0.0
        %558 = vmatpush1.msra.mxu0 0.0
        %559 = vmatprep.subr.mxu0 0.0
        %560 = vmatpush1.msra.mxu0 0.0
        %561 = vmatprep.subr.mxu0 0.0
        %562 = vmatpush1.msra.mxu0 0.0
        %563 = vmatprep.subr.mxu0 0.0
        %564 = vmatpush1.msra.mxu0 0.0
        %565 = vmatprep.subr.mxu0 0.0
        %566 = vmatpush1.msra.mxu0 0.0
        %567 = vmatprep.subr.mxu0 0.0
        %568 = vmatpush1.msra.mxu0 0.0
        %569 = vmatprep.subr.mxu0 0.0
        %570 = vmatpush1.msra.mxu0 0.0
        %571 = vmatprep.subr.mxu0 0.0
        %572 = vmatpush1.msra.mxu0 0.0
        %573 = vmatprep.subr.mxu0 0.0
        %574 = vmatpush1.msra.mxu0 0.0
        %575 = vmatprep.subr.mxu0 0.0
        %576 = vmatpush1.msra.mxu0 0.0
        %577 = vmatprep.subr.mxu0 0.0
        %578 = vmatpush1.msra.mxu0 0.0
        %579 = vmatprep.subr.mxu0 0.0
        %580 = vmatpush1.msra.mxu0 0.0
        %581 = vmatprep.subr.mxu0 0.0
        %582 = vmatpush1.msra.mxu0 0.0
        %583 = vmatprep.subr.mxu0 0.0
        %584 = vmatpush1.msra.mxu0 0.0
        %585 = vmatprep.subr.mxu0 0.0
        %586 = vmatpush1.msra.mxu0 0.0
        %587 = vmatprep.subr.mxu0 0.0
        %588 = vmatpush1.msra.mxu0 0.0
        %589 = vmatprep.subr.mxu0 0.0
        %590 = vmatpush1.msra.mxu0 0.0
        %591 = vmatprep.subr.mxu0 0.0
        %592 = vmatpush1.msra.mxu0 0.0
        %593 = vmatprep.subr.mxu0 0.0
        %594 = vmatpush1.msra.mxu0 0.0
        %595 = vmatprep.subr.mxu0 0.0
        %596 = vmatpush1.msra.mxu0 0.0
        %597 = vmatprep.subr.mxu0 0.0
        %598 = vmatpush1.msra.mxu0 0.0
        %599 = vmatprep.mubr.f32.mxu0 0.0
        %600 = vmatmul.mubr.f32.gmra.mrb[0].mxu0 %v530
        %v601 = vpop.f32.mrb[0].mxu0
        %v602 = vadd.f32 0.0, %v601
        %v603 = vpop.f32.mrb[0].mxu0
        %604 = vmatprep.mubr.f32.mxu0 0.0
        %605 = vmatmul.mubr.f32.gmra.mrb[0].mxu0 %v533
        %v606 = vpop.f32.mrb[0].mxu0
        %v607 = vadd.f32 0.0, %v606
        %v608 = vpop.f32.mrb[0].mxu0
        %609 = vdwg.mxu0
        %s610 = scalar_lea.vmem %s3, 4
        %v611 = vld [vmem:[%s610] sm:$0x7]
        %vm612 = vcmask 23552
        %v614 = vsel %vm612, %v602, 0
        %v617 = vsel %vm612, %v607, 0
        %vm619 = vcmask 1042432
        %v621 = vsel %vm619, %v611, 0
        %623 = vmatprep.subr.mxu0 0.0
        %624 = vmatpush1.msra.mxu0 %v621
        %625 = vmatprep.subr.mxu0 0.0
        %626 = vmatpush1.msra.mxu0 0.0
        %627 = vmatprep.subr.mxu0 0.0
        %628 = vmatpush1.msra.mxu0 0.0
        %629 = vmatprep.subr.mxu0 0.0
        %630 = vmatpush1.msra.mxu0 0.0
        %631 = vmatprep.subr.mxu0 0.0
        %632 = vmatpush1.msra.mxu0 0.0
        %633 = vmatprep.subr.mxu0 0.0
        %634 = vmatpush1.msra.mxu0 0.0
        %635 = vmatprep.subr.mxu0 0.0
        %636 = vmatpush1.msra.mxu0 0.0
        %637 = vmatprep.subr.mxu0 0.0
        %638 = vmatpush1.msra.mxu0 0.0
        %639 = vmatprep.subr.mxu0 0.0
        %640 = vmatpush1.msra.mxu0 0.0
        %641 = vmatprep.subr.mxu0 0.0
        %642 = vmatpush1.msra.mxu0 0.0
        %643 = vmatprep.subr.mxu0 0.0
        %644 = vmatpush1.msra.mxu0 0.0
        %645 = vmatprep.subr.mxu0 0.0
        %646 = vmatpush1.msra.mxu0 0.0
        %647 = vmatprep.subr.mxu0 0.0
        %648 = vmatpush1.msra.mxu0 0.0
        %649 = vmatprep.subr.mxu0 0.0
        %650 = vmatpush1.msra.mxu0 0.0
        %651 = vmatprep.subr.mxu0 0.0
        %652 = vmatpush1.msra.mxu0 0.0
        %653 = vmatprep.subr.mxu0 0.0
        %654 = vmatpush1.msra.mxu0 0.0
        %655 = vmatprep.subr.mxu0 0.0
        %656 = vmatpush1.msra.mxu0 0.0
        %657 = vmatprep.subr.mxu0 0.0
        %658 = vmatpush1.msra.mxu0 0.0
        %659 = vmatprep.subr.mxu0 0.0
        %660 = vmatpush1.msra.mxu0 0.0
        %661 = vmatprep.subr.mxu0 0.0
        %662 = vmatpush1.msra.mxu0 0.0
        %663 = vmatprep.subr.mxu0 0.0
        %664 = vmatpush1.msra.mxu0 0.0
        %665 = vmatprep.subr.mxu0 0.0
        %666 = vmatpush1.msra.mxu0 0.0
        %667 = vmatprep.subr.mxu0 0.0
        %668 = vmatpush1.msra.mxu0 0.0
        %669 = vmatprep.subr.mxu0 0.0
        %670 = vmatpush1.msra.mxu0 0.0
        %671 = vmatprep.subr.mxu0 0.0
        %672 = vmatpush1.msra.mxu0 0.0
        %673 = vmatprep.subr.mxu0 0.0
        %674 = vmatpush1.msra.mxu0 0.0
        %675 = vmatprep.subr.mxu0 0.0
        %676 = vmatpush1.msra.mxu0 0.0
        %677 = vmatprep.subr.mxu0 0.0
        %678 = vmatpush1.msra.mxu0 0.0
        %679 = vmatprep.subr.mxu0 0.0
        %680 = vmatpush1.msra.mxu0 0.0
        %681 = vmatprep.subr.mxu0 0.0
        %682 = vmatpush1.msra.mxu0 0.0
        %683 = vmatprep.subr.mxu0 0.0
        %684 = vmatpush1.msra.mxu0 0.0
        %685 = vmatprep.subr.mxu0 0.0
        %686 = vmatpush1.msra.mxu0 0.0
        %687 = vmatprep.mubr.f32.mxu0 0.0
        %688 = vmatmul.mubr.f32.gmra.mrb[0].mxu0 %v614
        %v689 = vpop.f32.mrb[0].mxu0
        %v690 = vadd.f32 0.0, %v689
        %v691 = vpop.f32.mrb[0].mxu0
        %692 = vmatprep.mubr.f32.mxu0 0.0
        %693 = vmatmul.mubr.f32.gmra.mrb[0].mxu0 %v617
        %v694 = vpop.f32.mrb[0].mxu0
        %v695 = vadd.f32 0.0, %v694
        %v696 = vpop.f32.mrb[0].mxu0
        %697 = vdwg.mxu0
        %v699 = vsel %vm612, %v517, 0
        %v702 = vsel %vm612, %v522, 0
        %v705 = vsel %vm619, %v525, 0
        %707 = vmatprep.subr.mxu0 0.0
        %708 = vmatpush1.msra.mxu0 %v705
        %709 = vmatprep.subr.mxu0 0.0
        %710 = vmatpush1.msra.mxu0 0.0
        %711 = vmatprep.subr.mxu0 0.0
        %712 = vmatpush1.msra.mxu0 0.0
        %713 = vmatprep.subr.mxu0 0.0
        %714 = vmatpush1.msra.mxu0 0.0
        %715 = vmatprep.subr.mxu0 0.0
        %716 = vmatpush1.msra.mxu0 0.0
        %717 = vmatprep.subr.mxu0 0.0
        %718 = vmatpush1.msra.mxu0 0.0
        %719 = vmatprep.subr.mxu0 0.0
        %720 = vmatpush1.msra.mxu0 0.0
        %721 = vmatprep.subr.mxu0 0.0
        %722 = vmatpush1.msra.mxu0 0.0
        %723 = vmatprep.subr.mxu0 0.0
        %724 = vmatpush1.msra.mxu0 0.0
        %725 = vmatprep.subr.mxu0 0.0
        %726 = vmatpush1.msra.mxu0 0.0
        %727 = vmatprep.subr.mxu0 0.0
        %728 = vmatpush1.msra.mxu0 0.0
        %729 = vmatprep.subr.mxu0 0.0
        %730 = vmatpush1.msra.mxu0 0.0
        %731 = vmatprep.subr.mxu0 0.0
        %732 = vmatpush1.msra.mxu0 0.0
        %733 = vmatprep.subr.mxu0 0.0
        %734 = vmatpush1.msra.mxu0 0.0
        %735 = vmatprep.subr.mxu0 0.0
        %736 = vmatpush1.msra.mxu0 0.0
        %737 = vmatprep.subr.mxu0 0.0
        %738 = vmatpush1.msra.mxu0 0.0
        %739 = vmatprep.subr.mxu0 0.0
        %740 = vmatpush1.msra.mxu0 0.0
        %741 = vmatprep.subr.mxu0 0.0
        %742 = vmatpush1.msra.mxu0 0.0
        %743 = vmatprep.subr.mxu0 0.0
        %744 = vmatpush1.msra.mxu0 0.0
        %745 = vmatprep.subr.mxu0 0.0
        %746 = vmatpush1.msra.mxu0 0.0
        %747 = vmatprep.subr.mxu0 0.0
        %748 = vmatpush1.msra.mxu0 0.0
        %749 = vmatprep.subr.mxu0 0.0
        %750 = vmatpush1.msra.mxu0 0.0
        %751 = vmatprep.subr.mxu0 0.0
        %752 = vmatpush1.msra.mxu0 0.0
        %753 = vmatprep.subr.mxu0 0.0
        %754 = vmatpush1.msra.mxu0 0.0
        %755 = vmatprep.subr.mxu0 0.0
        %756 = vmatpush1.msra.mxu0 0.0
        %757 = vmatprep.subr.mxu0 0.0
        %758 = vmatpush1.msra.mxu0 0.0
        %759 = vmatprep.subr.mxu0 0.0
        %760 = vmatpush1.msra.mxu0 0.0
        %761 = vmatprep.subr.mxu0 0.0
        %762 = vmatpush1.msra.mxu0 0.0
        %763 = vmatprep.subr.mxu0 0.0
        %764 = vmatpush1.msra.mxu0 0.0
        %765 = vmatprep.subr.mxu0 0.0
        %766 = vmatpush1.msra.mxu0 0.0
        %767 = vmatprep.subr.mxu0 0.0
        %768 = vmatpush1.msra.mxu0 0.0
        %769 = vmatprep.subr.mxu0 0.0
        %770 = vmatpush1.msra.mxu0 0.0
        %771 = vmatprep.mubr.f32.mxu0 0.0
        %772 = vmatmul.mubr.f32.gmra.mrb[0].mxu0 %v699
        %v773 = vpop.f32.mrb[0].mxu0
        %v774 = vadd.f32 %v690, %v773
        %v775 = vpop.f32.mrb[0].mxu0
        %776 = vmatprep.mubr.f32.mxu0 0.0
        %777 = vmatmul.mubr.f32.gmra.mrb[0].mxu0 %v702
        %v778 = vpop.f32.mrb[0].mxu0
        %v779 = vadd.f32 %v695, %v778
        %v780 = vpop.f32.mrb[0].mxu0
        %781 = vdwg.mxu0
        %s782 = scalar_lea.vmem %s5, 32
        %v783 = vld [vmem:[%s782] sm:$0xff]
        %v784 = vld [vmem:[%s782 + $0x8] sm:$0x1]
        %v786 = vsel %vm440, %v783, 0
        %v789 = vsel %vm440, %v784, 0
        %791 = vmatprep.subr.mxu0 0.0
        %792 = vmatpush1.msra.mxu0 %v427
        %793 = vmatprep.subr.mxu0 0.0
        %794 = vmatpush1.msra.mxu0 %v428
        %795 = vmatprep.subr.mxu0 0.0
        %796 = vmatpush1.msra.mxu0 %v429
        %797 = vmatprep.subr.mxu0 0.0
        %798 = vmatpush1.msra.mxu0 %v430
        %799 = vmatprep.subr.mxu0 0.0
        %800 = vmatpush1.msra.mxu0 %v431
        %801 = vmatprep.subr.mxu0 0.0
        %802 = vmatpush1.msra.mxu0 %v432
        %803 = vmatprep.subr.mxu0 0.0
        %804 = vmatpush1.msra.mxu0 %v433
        %805 = vmatprep.subr.mxu0 0.0
        %806 = vmatpush1.msra.mxu0 %v434
        %807 = vmatprep.subr.mxu0 0.0
        %808 = vmatpush1.msra.mxu0 %v435
        %809 = vmatprep.subr.mxu0 0.0
        %810 = vmatpush1.msra.mxu0 %v436
        %811 = vmatprep.subr.mxu0 0.0
        %812 = vmatpush1.msra.mxu0 %v448
        %813 = vmatprep.subr.mxu0 0.0
        %814 = vmatpush1.msra.mxu0 0.0
        %815 = vmatprep.subr.mxu0 0.0
        %816 = vmatpush1.msra.mxu0 0.0
        %817 = vmatprep.subr.mxu0 0.0
        %818 = vmatpush1.msra.mxu0 0.0
        %819 = vmatprep.subr.mxu0 0.0
        %820 = vmatpush1.msra.mxu0 0.0
        %821 = vmatprep.subr.mxu0 0.0
        %822 = vmatpush1.msra.mxu0 0.0
        %823 = vmatprep.subr.mxu0 0.0
        %824 = vmatpush1.msra.mxu0 0.0
        %825 = vmatprep.subr.mxu0 0.0
        %826 = vmatpush1.msra.mxu0 0.0
        %827 = vmatprep.subr.mxu0 0.0
        %828 = vmatpush1.msra.mxu0 0.0
        %829 = vmatprep.subr.mxu0 0.0
        %830 = vmatpush1.msra.mxu0 0.0
        %831 = vmatprep.subr.mxu0 0.0
        %832 = vmatpush1.msra.mxu0 0.0
        %833 = vmatprep.subr.mxu0 0.0
        %834 = vmatpush1.msra.mxu0 0.0
        %835 = vmatprep.subr.mxu0 0.0
        %836 = vmatpush1.msra.mxu0 0.0
        %837 = vmatprep.subr.mxu0 0.0
        %838 = vmatpush1.msra.mxu0 0.0
        %839 = vmatprep.subr.mxu0 0.0
        %840 = vmatpush1.msra.mxu0 0.0
        %841 = vmatprep.subr.mxu0 0.0
        %842 = vmatpush1.msra.mxu0 0.0
        %843 = vmatprep.subr.mxu0 0.0
        %844 = vmatpush1.msra.mxu0 0.0
        %845 = vmatprep.subr.mxu0 0.0
        %846 = vmatpush1.msra.mxu0 0.0
        %847 = vmatprep.subr.mxu0 0.0
        %848 = vmatpush1.msra.mxu0 0.0
        %849 = vmatprep.subr.mxu0 0.0
        %850 = vmatpush1.msra.mxu0 0.0
        %851 = vmatprep.subr.mxu0 0.0
        %852 = vmatpush1.msra.mxu0 0.0
        %853 = vmatprep.subr.mxu0 0.0
        %854 = vmatpush1.msra.mxu0 0.0
        %855 = vmatprep.mubr.f32.mxu0 0.0
        %856 = vmatmul.mubr.f32.gmra.mrb[0].mxu0 %v786
        %v857 = vpop.f32.mrb[0].mxu0
        %v858 = vadd.f32 0.0, %v857
        %v859 = vpop.f32.mrb[0].mxu0
        %860 = vmatprep.mubr.f32.mxu0 0.0
        %861 = vmatmul.mubr.f32.gmra.mrb[0].mxu0 %v789
        %v862 = vpop.f32.mrb[0].mxu0
        %v863 = vadd.f32 0.0, %v862
        %v864 = vpop.f32.mrb[0].mxu0
        %865 = vdwg.mxu0
        %s866 = scalar_lea.vmem %s3, 8
        %v867 = vld [vmem:[%s866] sm:$0x7]
        %v869 = vsel %vm612, %v858, 0
        %v872 = vsel %vm612, %v863, 0
        %v875 = vsel %vm619, %v867, 0
        %877 = vmatprep.subr.mxu0 0.0
        %878 = vmatpush1.msra.mxu0 %v875
        %879 = vmatprep.subr.mxu0 0.0
        %880 = vmatpush1.msra.mxu0 0.0
        %881 = vmatprep.subr.mxu0 0.0
        %882 = vmatpush1.msra.mxu0 0.0
        %883 = vmatprep.subr.mxu0 0.0
        %884 = vmatpush1.msra.mxu0 0.0
        %885 = vmatprep.subr.mxu0 0.0
        %886 = vmatpush1.msra.mxu0 0.0
        %887 = vmatprep.subr.mxu0 0.0
        %888 = vmatpush1.msra.mxu0 0.0
        %889 = vmatprep.subr.mxu0 0.0
        %890 = vmatpush1.msra.mxu0 0.0
        %891 = vmatprep.subr.mxu0 0.0
        %892 = vmatpush1.msra.mxu0 0.0
        %893 = vmatprep.subr.mxu0 0.0
        %894 = vmatpush1.msra.mxu0 0.0
        %895 = vmatprep.subr.mxu0 0.0
        %896 = vmatpush1.msra.mxu0 0.0
        %897 = vmatprep.subr.mxu0 0.0
        %898 = vmatpush1.msra.mxu0 0.0
        %899 = vmatprep.subr.mxu0 0.0
        %900 = vmatpush1.msra.mxu0 0.0
        %901 = vmatprep.subr.mxu0 0.0
        %902 = vmatpush1.msra.mxu0 0.0
        %903 = vmatprep.subr.mxu0 0.0
        %904 = vmatpush1.msra.mxu0 0.0
        %905 = vmatprep.subr.mxu0 0.0
        %906 = vmatpush1.msra.mxu0 0.0
        %907 = vmatprep.subr.mxu0 0.0
        %908 = vmatpush1.msra.mxu0 0.0
        %909 = vmatprep.subr.mxu0 0.0
        %910 = vmatpush1.msra.mxu0 0.0
        %911 = vmatprep.subr.mxu0 0.0
        %912 = vmatpush1.msra.mxu0 0.0
        %913 = vmatprep.subr.mxu0 0.0
        %914 = vmatpush1.msra.mxu0 0.0
        %915 = vmatprep.subr.mxu0 0.0
        %916 = vmatpush1.msra.mxu0 0.0
        %917 = vmatprep.subr.mxu0 0.0
        %918 = vmatpush1.msra.mxu0 0.0
        %919 = vmatprep.subr.mxu0 0.0
        %920 = vmatpush1.msra.mxu0 0.0
        %921 = vmatprep.subr.mxu0 0.0
        %922 = vmatpush1.msra.mxu0 0.0
        %923 = vmatprep.subr.mxu0 0.0
        %924 = vmatpush1.msra.mxu0 0.0
        %925 = vmatprep.subr.mxu0 0.0
        %926 = vmatpush1.msra.mxu0 0.0
        %927 = vmatprep.subr.mxu0 0.0
        %928 = vmatpush1.msra.mxu0 0.0
        %929 = vmatprep.subr.mxu0 0.0
        %930 = vmatpush1.msra.mxu0 0.0
        %931 = vmatprep.subr.mxu0 0.0
        %932 = vmatpush1.msra.mxu0 0.0
        %933 = vmatprep.subr.mxu0 0.0
        %934 = vmatpush1.msra.mxu0 0.0
        %935 = vmatprep.subr.mxu0 0.0
        %936 = vmatpush1.msra.mxu0 0.0
        %937 = vmatprep.subr.mxu0 0.0
        %938 = vmatpush1.msra.mxu0 0.0
        %939 = vmatprep.subr.mxu0 0.0
        %940 = vmatpush1.msra.mxu0 0.0
        %941 = vmatprep.mubr.f32.mxu0 0.0
        %942 = vmatmul.mubr.f32.gmra.mrb[0].mxu0 %v869
        %v943 = vpop.f32.mrb[0].mxu0
        %v944 = vadd.f32 0.0, %v943
        %v945 = vpop.f32.mrb[0].mxu0
        %946 = vmatprep.mubr.f32.mxu0 0.0
        %947 = vmatmul.mubr.f32.gmra.mrb[0].mxu0 %v872
        %v948 = vpop.f32.mrb[0].mxu0
        %v949 = vadd.f32 0.0, %v948
        %v950 = vpop.f32.mrb[0].mxu0
        %951 = vdwg.mxu0
        %v952 = vadd.f32 %v774, %v944
        %v953 = vadd.f32 %v779, %v949
        %s954 = scalar_lea.vmem %s5, 48
        %v955 = vld [vmem:[%s954] sm:$0xff]
        %v956 = vld [vmem:[%s954 + $0x8] sm:$0x1]
        %v958 = vsel %vm440, %v955, 0
        %v961 = vsel %vm440, %v956, 0
        %963 = vmatprep.subr.mxu0 0.0
        %964 = vmatpush1.msra.mxu0 %v427
        %965 = vmatprep.subr.mxu0 0.0
        %966 = vmatpush1.msra.mxu0 %v428
        %967 = vmatprep.subr.mxu0 0.0
        %968 = vmatpush1.msra.mxu0 %v429
        %969 = vmatprep.subr.mxu0 0.0
        %970 = vmatpush1.msra.mxu0 %v430
        %971 = vmatprep.subr.mxu0 0.0
        %972 = vmatpush1.msra.mxu0 %v431
        %973 = vmatprep.subr.mxu0 0.0
        %974 = vmatpush1.msra.mxu0 %v432
        %975 = vmatprep.subr.mxu0 0.0
        %976 = vmatpush1.msra.mxu0 %v433
        %977 = vmatprep.subr.mxu0 0.0
        %978 = vmatpush1.msra.mxu0 %v434
        %979 = vmatprep.subr.mxu0 0.0
        %980 = vmatpush1.msra.mxu0 %v435
        %981 = vmatprep.subr.mxu0 0.0
        %982 = vmatpush1.msra.mxu0 %v436
        %983 = vmatprep.subr.mxu0 0.0
        %984 = vmatpush1.msra.mxu0 %v448
        %985 = vmatprep.subr.mxu0 0.0
        %986 = vmatpush1.msra.mxu0 0.0
        %987 = vmatprep.subr.mxu0 0.0
        %988 = vmatpush1.msra.mxu0 0.0
        %989 = vmatprep.subr.mxu0 0.0
        %990 = vmatpush1.msra.mxu0 0.0
        %991 = vmatprep.subr.mxu0 0.0
        %992 = vmatpush1.msra.mxu0 0.0
        %993 = vmatprep.subr.mxu0 0.0
        %994 = vmatpush1.msra.mxu0 0.0
        %995 = vmatprep.subr.mxu0 0.0
        %996 = vmatpush1.msra.mxu0 0.0
        %997 = vmatprep.subr.mxu0 0.0
        %998 = vmatpush1.msra.mxu0 0.0
        %999 = vmatprep.subr.mxu0 0.0
        %1000 = vmatpush1.msra.mxu0 0.0
        %1001 = vmatprep.subr.mxu0 0.0
        %1002 = vmatpush1.msra.mxu0 0.0
        %1003 = vmatprep.subr.mxu0 0.0
        %1004 = vmatpush1.msra.mxu0 0.0
        %1005 = vmatprep.subr.mxu0 0.0
        %1006 = vmatpush1.msra.mxu0 0.0
        %1007 = vmatprep.subr.mxu0 0.0
        %1008 = vmatpush1.msra.mxu0 0.0
        %1009 = vmatprep.subr.mxu0 0.0
        %1010 = vmatpush1.msra.mxu0 0.0
        %1011 = vmatprep.subr.mxu0 0.0
        %1012 = vmatpush1.msra.mxu0 0.0
        %1013 = vmatprep.subr.mxu0 0.0
        %1014 = vmatpush1.msra.mxu0 0.0
        %1015 = vmatprep.subr.mxu0 0.0
        %1016 = vmatpush1.msra.mxu0 0.0
        %1017 = vmatprep.subr.mxu0 0.0
        %1018 = vmatpush1.msra.mxu0 0.0
        %1019 = vmatprep.subr.mxu0 0.0
        %1020 = vmatpush1.msra.mxu0 0.0
        %1021 = vmatprep.subr.mxu0 0.0
        %1022 = vmatpush1.msra.mxu0 0.0
        %1023 = vmatprep.subr.mxu0 0.0
        %1024 = vmatpush1.msra.mxu0 0.0
        %1025 = vmatprep.subr.mxu0 0.0
        %1026 = vmatpush1.msra.mxu0 0.0
        %1027 = vmatprep.mubr.f32.mxu0 0.0
        %1028 = vmatmul.mubr.f32.gmra.mrb[0].mxu0 %v958
        %v1029 = vpop.f32.mrb[0].mxu0
        %v1030 = vadd.f32 0.0, %v1029
        %v1031 = vpop.f32.mrb[0].mxu0
        %1032 = vmatprep.mubr.f32.mxu0 0.0
        %1033 = vmatmul.mubr.f32.gmra.mrb[0].mxu0 %v961
        %v1034 = vpop.f32.mrb[0].mxu0
        %v1035 = vadd.f32 0.0, %v1034
        %v1036 = vpop.f32.mrb[0].mxu0
        %1037 = vdwg.mxu0
        %s1038 = scalar_lea.vmem %s3, 12
        %v1039 = vld [vmem:[%s1038] sm:$0x7]
        %v1041 = vsel %vm612, %v1030, 0
        %v1044 = vsel %vm612, %v1035, 0
        %v1047 = vsel %vm619, %v1039, 0
        %1049 = vmatprep.subr.mxu0 0.0
        %1050 = vmatpush1.msra.mxu0 %v1047
        %1051 = vmatprep.subr.mxu0 0.0
        %1052 = vmatpush1.msra.mxu0 0.0
        %1053 = vmatprep.subr.mxu0 0.0
        %1054 = vmatpush1.msra.mxu0 0.0
        %1055 = vmatprep.subr.mxu0 0.0
        %1056 = vmatpush1.msra.mxu0 0.0
        %1057 = vmatprep.subr.mxu0 0.0
        %1058 = vmatpush1.msra.mxu0 0.0
        %1059 = vmatprep.subr.mxu0 0.0
        %1060 = vmatpush1.msra.mxu0 0.0
        %1061 = vmatprep.subr.mxu0 0.0
        %1062 = vmatpush1.msra.mxu0 0.0
        %1063 = vmatprep.subr.mxu0 0.0
        %1064 = vmatpush1.msra.mxu0 0.0
        %1065 = vmatprep.subr.mxu0 0.0
        %1066 = vmatpush1.msra.mxu0 0.0
        %1067 = vmatprep.subr.mxu0 0.0
        %1068 = vmatpush1.msra.mxu0 0.0
        %1069 = vmatprep.subr.mxu0 0.0
        %1070 = vmatpush1.msra.mxu0 0.0
        %1071 = vmatprep.subr.mxu0 0.0
        %1072 = vmatpush1.msra.mxu0 0.0
        %1073 = vmatprep.subr.mxu0 0.0
        %1074 = vmatpush1.msra.mxu0 0.0
        %1075 = vmatprep.subr.mxu0 0.0
        %1076 = vmatpush1.msra.mxu0 0.0
        %1077 = vmatprep.subr.mxu0 0.0
        %1078 = vmatpush1.msra.mxu0 0.0
        %1079 = vmatprep.subr.mxu0 0.0
        %1080 = vmatpush1.msra.mxu0 0.0
        %1081 = vmatprep.subr.mxu0 0.0
        %1082 = vmatpush1.msra.mxu0 0.0
        %1083 = vmatprep.subr.mxu0 0.0
        %1084 = vmatpush1.msra.mxu0 0.0
        %1085 = vmatprep.subr.mxu0 0.0
        %1086 = vmatpush1.msra.mxu0 0.0
        %1087 = vmatprep.subr.mxu0 0.0
        %1088 = vmatpush1.msra.mxu0 0.0
        %1089 = vmatprep.subr.mxu0 0.0
        %1090 = vmatpush1.msra.mxu0 0.0
        %1091 = vmatprep.subr.mxu0 0.0
        %1092 = vmatpush1.msra.mxu0 0.0
        %1093 = vmatprep.subr.mxu0 0.0
        %1094 = vmatpush1.msra.mxu0 0.0
        %1095 = vmatprep.subr.mxu0 0.0
        %1096 = vmatpush1.msra.mxu0 0.0
        %1097 = vmatprep.subr.mxu0 0.0
        %1098 = vmatpush1.msra.mxu0 0.0
        %1099 = vmatprep.subr.mxu0 0.0
        %1100 = vmatpush1.msra.mxu0 0.0
        %1101 = vmatprep.subr.mxu0 0.0
        %1102 = vmatpush1.msra.mxu0 0.0
        %1103 = vmatprep.subr.mxu0 0.0
        %1104 = vmatpush1.msra.mxu0 0.0
        %1105 = vmatprep.subr.mxu0 0.0
        %1106 = vmatpush1.msra.mxu0 0.0
        %1107 = vmatprep.subr.mxu0 0.0
        %1108 = vmatpush1.msra.mxu0 0.0
        %1109 = vmatprep.subr.mxu0 0.0
        %1110 = vmatpush1.msra.mxu0 0.0
        %1111 = vmatprep.subr.mxu0 0.0
        %1112 = vmatpush1.msra.mxu0 0.0
        %1113 = vmatprep.mubr.f32.mxu0 0.0
        %1114 = vmatmul.mubr.f32.gmra.mrb[0].mxu0 %v1041
        %v1115 = vpop.f32.mrb[0].mxu0
        %v1116 = vadd.f32 0.0, %v1115
        %v1117 = vpop.f32.mrb[0].mxu0
        %1118 = vmatprep.mubr.f32.mxu0 0.0
        %1119 = vmatmul.mubr.f32.gmra.mrb[0].mxu0 %v1044
        %v1120 = vpop.f32.mrb[0].mxu0
        %v1121 = vadd.f32 0.0, %v1120
        %v1122 = vpop.f32.mrb[0].mxu0
        %1123 = vdwg.mxu0
        %v1124 = vadd.f32 %v952, %v1116
        %v1125 = vadd.f32 %v953, %v1121
        %s1126 = scalar_lea.vmem %s5, 64
        %v1127 = vld [vmem:[%s1126] sm:$0xff]
        %v1128 = vld [vmem:[%s1126 + $0x8] sm:$0x1]
        %v1130 = vsel %vm440, %v1127, 0
        %v1133 = vsel %vm440, %v1128, 0
        %1135 = vmatprep.subr.mxu0 0.0
        %1136 = vmatpush1.msra.mxu0 %v427
        %1137 = vmatprep.subr.mxu0 0.0
        %1138 = vmatpush1.msra.mxu0 %v428
        %1139 = vmatprep.subr.mxu0 0.0
        %1140 = vmatpush1.msra.mxu0 %v429
        %1141 = vmatprep.subr.mxu0 0.0
        %1142 = vmatpush1.msra.mxu0 %v430
        %1143 = vmatprep.subr.mxu0 0.0
        %1144 = vmatpush1.msra.mxu0 %v431
        %1145 = vmatprep.subr.mxu0 0.0
        %1146 = vmatpush1.msra.mxu0 %v432
        %1147 = vmatprep.subr.mxu0 0.0
        %1148 = vmatpush1.msra.mxu0 %v433
        %1149 = vmatprep.subr.mxu0 0.0
        %1150 = vmatpush1.msra.mxu0 %v434
        %1151 = vmatprep.subr.mxu0 0.0
        %1152 = vmatpush1.msra.mxu0 %v435
        %1153 = vmatprep.subr.mxu0 0.0
        %1154 = vmatpush1.msra.mxu0 %v436
        %1155 = vmatprep.subr.mxu0 0.0
        %1156 = vmatpush1.msra.mxu0 %v448
        %1157 = vmatprep.subr.mxu0 0.0
        %1158 = vmatpush1.msra.mxu0 0.0
        %1159 = vmatprep.subr.mxu0 0.0
        %1160 = vmatpush1.msra.mxu0 0.0
        %1161 = vmatprep.subr.mxu0 0.0
        %1162 = vmatpush1.msra.mxu0 0.0
        %1163 = vmatprep.subr.mxu0 0.0
        %1164 = vmatpush1.msra.mxu0 0.0
        %1165 = vmatprep.subr.mxu0 0.0
        %1166 = vmatpush1.msra.mxu0 0.0
        %1167 = vmatprep.subr.mxu0 0.0
        %1168 = vmatpush1.msra.mxu0 0.0
        %1169 = vmatprep.subr.mxu0 0.0
        %1170 = vmatpush1.msra.mxu0 0.0
        %1171 = vmatprep.subr.mxu0 0.0
        %1172 = vmatpush1.msra.mxu0 0.0
        %1173 = vmatprep.subr.mxu0 0.0
        %1174 = vmatpush1.msra.mxu0 0.0
        %1175 = vmatprep.subr.mxu0 0.0
        %1176 = vmatpush1.msra.mxu0 0.0
        %1177 = vmatprep.subr.mxu0 0.0
        %1178 = vmatpush1.msra.mxu0 0.0
        %1179 = vmatprep.subr.mxu0 0.0
        %1180 = vmatpush1.msra.mxu0 0.0
        %1181 = vmatprep.subr.mxu0 0.0
        %1182 = vmatpush1.msra.mxu0 0.0
        %1183 = vmatprep.subr.mxu0 0.0
        %1184 = vmatpush1.msra.mxu0 0.0
        %1185 = vmatprep.subr.mxu0 0.0
        %1186 = vmatpush1.msra.mxu0 0.0
        %1187 = vmatprep.subr.mxu0 0.0
        %1188 = vmatpush1.msra.mxu0 0.0
        %1189 = vmatprep.subr.mxu0 0.0
        %1190 = vmatpush1.msra.mxu0 0.0
        %1191 = vmatprep.subr.mxu0 0.0
        %1192 = vmatpush1.msra.mxu0 0.0
        %1193 = vmatprep.subr.mxu0 0.0
        %1194 = vmatpush1.msra.mxu0 0.0
        %1195 = vmatprep.subr.mxu0 0.0
        %1196 = vmatpush1.msra.mxu0 0.0
        %1197 = vmatprep.subr.mxu0 0.0
        %1198 = vmatpush1.msra.mxu0 0.0
        %1199 = vmatprep.mubr.f32.mxu0 0.0
        %1200 = vmatmul.mubr.f32.gmra.mrb[0].mxu0 %v1130
        %v1201 = vpop.f32.mrb[0].mxu0
        %v1202 = vadd.f32 0.0, %v1201
        %v1203 = vpop.f32.mrb[0].mxu0
        %1204 = vmatprep.mubr.f32.mxu0 0.0
        %1205 = vmatmul.mubr.f32.gmra.mrb[0].mxu0 %v1133
        %v1206 = vpop.f32.mrb[0].mxu0
        %v1207 = vadd.f32 0.0, %v1206
        %v1208 = vpop.f32.mrb[0].mxu0
        %1209 = vdwg.mxu0
        %s1210 = scalar_lea.vmem %s3, 16
        %v1211 = vld [vmem:[%s1210] sm:$0x7]
        %v1213 = vsel %vm612, %v1202, 0
        %v1216 = vsel %vm612, %v1207, 0
        %v1219 = vsel %vm619, %v1211, 0
        %1221 = vmatprep.subr.mxu0 0.0
        %1222 = vmatpush1.msra.mxu0 %v1219
        %1223 = vmatprep.subr.mxu0 0.0
        %1224 = vmatpush1.msra.mxu0 0.0
        %1225 = vmatprep.subr.mxu0 0.0
        %1226 = vmatpush1.msra.mxu0 0.0
        %1227 = vmatprep.subr.mxu0 0.0
        %1228 = vmatpush1.msra.mxu0 0.0
        %1229 = vmatprep.subr.mxu0 0.0
        %1230 = vmatpush1.msra.mxu0 0.0
        %1231 = vmatprep.subr.mxu0 0.0
        %1232 = vmatpush1.msra.mxu0 0.0
        %1233 = vmatprep.subr.mxu0 0.0
        %1234 = vmatpush1.msra.mxu0 0.0
        %1235 = vmatprep.subr.mxu0 0.0
        %1236 = vmatpush1.msra.mxu0 0.0
        %1237 = vmatprep.subr.mxu0 0.0
        %1238 = vmatpush1.msra.mxu0 0.0
        %1239 = vmatprep.subr.mxu0 0.0
        %1240 = vmatpush1.msra.mxu0 0.0
        %1241 = vmatprep.subr.mxu0 0.0
        %1242 = vmatpush1.msra.mxu0 0.0
        %1243 = vmatprep.subr.mxu0 0.0
        %1244 = vmatpush1.msra.mxu0 0.0
        %1245 = vmatprep.subr.mxu0 0.0
        %1246 = vmatpush1.msra.mxu0 0.0
        %1247 = vmatprep.subr.mxu0 0.0
        %1248 = vmatpush1.msra.mxu0 0.0
        %1249 = vmatprep.subr.mxu0 0.0
        %1250 = vmatpush1.msra.mxu0 0.0
        %1251 = vmatprep.subr.mxu0 0.0
        %1252 = vmatpush1.msra.mxu0 0.0
        %1253 = vmatprep.subr.mxu0 0.0
        %1254 = vmatpush1.msra.mxu0 0.0
        %1255 = vmatprep.subr.mxu0 0.0
        %1256 = vmatpush1.msra.mxu0 0.0
        %1257 = vmatprep.subr.mxu0 0.0
        %1258 = vmatpush1.msra.mxu0 0.0
        %1259 = vmatprep.subr.mxu0 0.0
        %1260 = vmatpush1.msra.mxu0 0.0
        %1261 = vmatprep.subr.mxu0 0.0
        %1262 = vmatpush1.msra.mxu0 0.0
        %1263 = vmatprep.subr.mxu0 0.0
        %1264 = vmatpush1.msra.mxu0 0.0
        %1265 = vmatprep.subr.mxu0 0.0
        %1266 = vmatpush1.msra.mxu0 0.0
        %1267 = vmatprep.subr.mxu0 0.0
        %1268 = vmatpush1.msra.mxu0 0.0
        %1269 = vmatprep.subr.mxu0 0.0
        %1270 = vmatpush1.msra.mxu0 0.0
        %1271 = vmatprep.subr.mxu0 0.0
        %1272 = vmatpush1.msra.mxu0 0.0
        %1273 = vmatprep.subr.mxu0 0.0
        %1274 = vmatpush1.msra.mxu0 0.0
        %1275 = vmatprep.subr.mxu0 0.0
        %1276 = vmatpush1.msra.mxu0 0.0
        %1277 = vmatprep.subr.mxu0 0.0
        %1278 = vmatpush1.msra.mxu0 0.0
        %1279 = vmatprep.subr.mxu0 0.0
        %1280 = vmatpush1.msra.mxu0 0.0
        %1281 = vmatprep.subr.mxu0 0.0
        %1282 = vmatpush1.msra.mxu0 0.0
        %1283 = vmatprep.subr.mxu0 0.0
        %1284 = vmatpush1.msra.mxu0 0.0
        %1285 = vmatprep.mubr.f32.mxu0 0.0
        %1286 = vmatmul.mubr.f32.gmra.mrb[0].mxu0 %v1213
        %v1287 = vpop.f32.mrb[0].mxu0
        %v1288 = vadd.f32 0.0, %v1287
        %v1289 = vpop.f32.mrb[0].mxu0
        %1290 = vmatprep.mubr.f32.mxu0 0.0
        %1291 = vmatmul.mubr.f32.gmra.mrb[0].mxu0 %v1216
        %v1292 = vpop.f32.mrb[0].mxu0
        %v1293 = vadd.f32 0.0, %v1292
        %v1294 = vpop.f32.mrb[0].mxu0
        %1295 = vdwg.mxu0
        %v1296 = vadd.f32 %v1124, %v1288
        %v1297 = vadd.f32 %v1125, %v1293
        %s1298 = scalar_lea.vmem %s5, 80
        %v1299 = vld [vmem:[%s1298] sm:$0xff]
        %v1300 = vld [vmem:[%s1298 + $0x8] sm:$0x1]
        %v1302 = vsel %vm440, %v1299, 0
        %v1305 = vsel %vm440, %v1300, 0
        %1307 = vmatprep.subr.mxu0 0.0
        %1308 = vmatpush1.msra.mxu0 %v427
        %1309 = vmatprep.subr.mxu0 0.0
        %1310 = vmatpush1.msra.mxu0 %v428
        %1311 = vmatprep.subr.mxu0 0.0
        %1312 = vmatpush1.msra.mxu0 %v429
        %1313 = vmatprep.subr.mxu0 0.0
        %1314 = vmatpush1.msra.mxu0 %v430
        %1315 = vmatprep.subr.mxu0 0.0
        %1316 = vmatpush1.msra.mxu0 %v431
        %1317 = vmatprep.subr.mxu0 0.0
        %1318 = vmatpush1.msra.mxu0 %v432
        %1319 = vmatprep.subr.mxu0 0.0
        %1320 = vmatpush1.msra.mxu0 %v433
        %1321 = vmatprep.subr.mxu0 0.0
        %1322 = vmatpush1.msra.mxu0 %v434
        %1323 = vmatprep.subr.mxu0 0.0
        %1324 = vmatpush1.msra.mxu0 %v435
        %1325 = vmatprep.subr.mxu0 0.0
        %1326 = vmatpush1.msra.mxu0 %v436
        %1327 = vmatprep.subr.mxu0 0.0
        %1328 = vmatpush1.msra.mxu0 %v448
        %1329 = vmatprep.subr.mxu0 0.0
        %1330 = vmatpush1.msra.mxu0 0.0
        %1331 = vmatprep.subr.mxu0 0.0
        %1332 = vmatpush1.msra.mxu0 0.0
        %1333 = vmatprep.subr.mxu0 0.0
        %1334 = vmatpush1.msra.mxu0 0.0
        %1335 = vmatprep.subr.mxu0 0.0
        %1336 = vmatpush1.msra.mxu0 0.0
        %1337 = vmatprep.subr.mxu0 0.0
        %1338 = vmatpush1.msra.mxu0 0.0
        %1339 = vmatprep.subr.mxu0 0.0
        %1340 = vmatpush1.msra.mxu0 0.0
        %1341 = vmatprep.subr.mxu0 0.0
        %1342 = vmatpush1.msra.mxu0 0.0
        %1343 = vmatprep.subr.mxu0 0.0
        %1344 = vmatpush1.msra.mxu0 0.0
        %1345 = vmatprep.subr.mxu0 0.0
        %1346 = vmatpush1.msra.mxu0 0.0
        %1347 = vmatprep.subr.mxu0 0.0
        %1348 = vmatpush1.msra.mxu0 0.0
        %1349 = vmatprep.subr.mxu0 0.0
        %1350 = vmatpush1.msra.mxu0 0.0
        %1351 = vmatprep.subr.mxu0 0.0
        %1352 = vmatpush1.msra.mxu0 0.0
        %1353 = vmatprep.subr.mxu0 0.0
        %1354 = vmatpush1.msra.mxu0 0.0
        %1355 = vmatprep.subr.mxu0 0.0
        %1356 = vmatpush1.msra.mxu0 0.0
        %1357 = vmatprep.subr.mxu0 0.0
        %1358 = vmatpush1.msra.mxu0 0.0
        %1359 = vmatprep.subr.mxu0 0.0
        %1360 = vmatpush1.msra.mxu0 0.0
        %1361 = vmatprep.subr.mxu0 0.0
        %1362 = vmatpush1.msra.mxu0 0.0
        %1363 = vmatprep.subr.mxu0 0.0
        %1364 = vmatpush1.msra.mxu0 0.0
        %1365 = vmatprep.subr.mxu0 0.0
        %1366 = vmatpush1.msra.mxu0 0.0
        %1367 = vmatprep.subr.mxu0 0.0
        %1368 = vmatpush1.msra.mxu0 0.0
        %1369 = vmatprep.subr.mxu0 0.0
        %1370 = vmatpush1.msra.mxu0 0.0
        %1371 = vmatprep.mubr.f32.mxu0 0.0
        %1372 = vmatmul.mubr.f32.gmra.mrb[0].mxu0 %v1302
        %v1373 = vpop.f32.mrb[0].mxu0
        %v1374 = vadd.f32 0.0, %v1373
        %v1375 = vpop.f32.mrb[0].mxu0
        %1376 = vmatprep.mubr.f32.mxu0 0.0
        %1377 = vmatmul.mubr.f32.gmra.mrb[0].mxu0 %v1305
        %v1378 = vpop.f32.mrb[0].mxu0
        %v1379 = vadd.f32 0.0, %v1378
        %v1380 = vpop.f32.mrb[0].mxu0
        %1381 = vdwg.mxu0
        %s1382 = scalar_lea.vmem %s3, 20
        %v1383 = vld [vmem:[%s1382] sm:$0x7]
        %v1385 = vsel %vm612, %v1374, 0
        %v1388 = vsel %vm612, %v1379, 0
        %v1391 = vsel %vm619, %v1383, 0
        %1393 = vmatprep.subr.mxu0 0.0
        %1394 = vmatpush1.msra.mxu0 %v1391
        %1395 = vmatprep.subr.mxu0 0.0
        %1396 = vmatpush1.msra.mxu0 0.0
        %1397 = vmatprep.subr.mxu0 0.0
        %1398 = vmatpush1.msra.mxu0 0.0
        %1399 = vmatprep.subr.mxu0 0.0
        %1400 = vmatpush1.msra.mxu0 0.0
        %1401 = vmatprep.subr.mxu0 0.0
        %1402 = vmatpush1.msra.mxu0 0.0
        %1403 = vmatprep.subr.mxu0 0.0
        %1404 = vmatpush1.msra.mxu0 0.0
        %1405 = vmatprep.subr.mxu0 0.0
        %1406 = vmatpush1.msra.mxu0 0.0
        %1407 = vmatprep.subr.mxu0 0.0
        %1408 = vmatpush1.msra.mxu0 0.0
        %1409 = vmatprep.subr.mxu0 0.0
        %1410 = vmatpush1.msra.mxu0 0.0
        %1411 = vmatprep.subr.mxu0 0.0
        %1412 = vmatpush1.msra.mxu0 0.0
        %1413 = vmatprep.subr.mxu0 0.0
        %1414 = vmatpush1.msra.mxu0 0.0
        %1415 = vmatprep.subr.mxu0 0.0
        %1416 = vmatpush1.msra.mxu0 0.0
        %1417 = vmatprep.subr.mxu0 0.0
        %1418 = vmatpush1.msra.mxu0 0.0
        %1419 = vmatprep.subr.mxu0 0.0
        %1420 = vmatpush1.msra.mxu0 0.0
        %1421 = vmatprep.subr.mxu0 0.0
        %1422 = vmatpush1.msra.mxu0 0.0
        %1423 = vmatprep.subr.mxu0 0.0
        %1424 = vmatpush1.msra.mxu0 0.0
        %1425 = vmatprep.subr.mxu0 0.0
        %1426 = vmatpush1.msra.mxu0 0.0
        %1427 = vmatprep.subr.mxu0 0.0
        %1428 = vmatpush1.msra.mxu0 0.0
        %1429 = vmatprep.subr.mxu0 0.0
        %1430 = vmatpush1.msra.mxu0 0.0
        %1431 = vmatprep.subr.mxu0 0.0
        %1432 = vmatpush1.msra.mxu0 0.0
        %1433 = vmatprep.subr.mxu0 0.0
        %1434 = vmatpush1.msra.mxu0 0.0
        %1435 = vmatprep.subr.mxu0 0.0
        %1436 = vmatpush1.msra.mxu0 0.0
        %1437 = vmatprep.subr.mxu0 0.0
        %1438 = vmatpush1.msra.mxu0 0.0
        %1439 = vmatprep.subr.mxu0 0.0
        %1440 = vmatpush1.msra.mxu0 0.0
        %1441 = vmatprep.subr.mxu0 0.0
        %1442 = vmatpush1.msra.mxu0 0.0
        %1443 = vmatprep.subr.mxu0 0.0
        %1444 = vmatpush1.msra.mxu0 0.0
        %1445 = vmatprep.subr.mxu0 0.0
        %1446 = vmatpush1.msra.mxu0 0.0
        %1447 = vmatprep.subr.mxu0 0.0
        %1448 = vmatpush1.msra.mxu0 0.0
        %1449 = vmatprep.subr.mxu0 0.0
        %1450 = vmatpush1.msra.mxu0 0.0
        %1451 = vmatprep.subr.mxu0 0.0
        %1452 = vmatpush1.msra.mxu0 0.0
        %1453 = vmatprep.subr.mxu0 0.0
        %1454 = vmatpush1.msra.mxu0 0.0
        %1455 = vmatprep.subr.mxu0 0.0
        %1456 = vmatpush1.msra.mxu0 0.0
        %1457 = vmatprep.mubr.f32.mxu0 0.0
        %1458 = vmatmul.mubr.f32.gmra.mrb[0].mxu0 %v1385
        %v1459 = vpop.f32.mrb[0].mxu0
        %v1460 = vadd.f32 0.0, %v1459
        %v1461 = vpop.f32.mrb[0].mxu0
        %1462 = vmatprep.mubr.f32.mxu0 0.0
        %1463 = vmatmul.mubr.f32.gmra.mrb[0].mxu0 %v1388
        %v1464 = vpop.f32.mrb[0].mxu0
        %v1465 = vadd.f32 0.0, %v1464
        %v1466 = vpop.f32.mrb[0].mxu0
        %1467 = vdwg.mxu0
        %v1468 = vadd.f32 %v1296, %v1460
        %v1469 = vadd.f32 %v1297, %v1465
        %s1470 = scalar_lea.vmem %s5, 96
        %v1471 = vld [vmem:[%s1470] sm:$0xff]
        %v1472 = vld [vmem:[%s1470 + $0x8] sm:$0x1]
        %v1474 = vsel %vm440, %v1471, 0
        %v1477 = vsel %vm440, %v1472, 0
        %1479 = vmatprep.subr.mxu0 0.0
        %1480 = vmatpush1.msra.mxu0 %v427
        %1481 = vmatprep.subr.mxu0 0.0
        %1482 = vmatpush1.msra.mxu0 %v428
        %1483 = vmatprep.subr.mxu0 0.0
        %1484 = vmatpush1.msra.mxu0 %v429
        %1485 = vmatprep.subr.mxu0 0.0
        %1486 = vmatpush1.msra.mxu0 %v430
        %1487 = vmatprep.subr.mxu0 0.0
        %1488 = vmatpush1.msra.mxu0 %v431
        %1489 = vmatprep.subr.mxu0 0.0
        %1490 = vmatpush1.msra.mxu0 %v432
        %1491 = vmatprep.subr.mxu0 0.0
        %1492 = vmatpush1.msra.mxu0 %v433
        %1493 = vmatprep.subr.mxu0 0.0
        %1494 = vmatpush1.msra.mxu0 %v434
        %1495 = vmatprep.subr.mxu0 0.0
        %1496 = vmatpush1.msra.mxu0 %v435
        %1497 = vmatprep.subr.mxu0 0.0
        %1498 = vmatpush1.msra.mxu0 %v436
        %1499 = vmatprep.subr.mxu0 0.0
        %1500 = vmatpush1.msra.mxu0 %v448
        %1501 = vmatprep.subr.mxu0 0.0
        %1502 = vmatpush1.msra.mxu0 0.0
        %1503 = vmatprep.subr.mxu0 0.0
        %1504 = vmatpush1.msra.mxu0 0.0
        %1505 = vmatprep.subr.mxu0 0.0
        %1506 = vmatpush1.msra.mxu0 0.0
        %1507 = vmatprep.subr.mxu0 0.0
        %1508 = vmatpush1.msra.mxu0 0.0
        %1509 = vmatprep.subr.mxu0 0.0
        %1510 = vmatpush1.msra.mxu0 0.0
        %1511 = vmatprep.subr.mxu0 0.0
        %1512 = vmatpush1.msra.mxu0 0.0
        %1513 = vmatprep.subr.mxu0 0.0
        %1514 = vmatpush1.msra.mxu0 0.0
        %1515 = vmatprep.subr.mxu0 0.0
        %1516 = vmatpush1.msra.mxu0 0.0
        %1517 = vmatprep.subr.mxu0 0.0
        %1518 = vmatpush1.msra.mxu0 0.0
        %1519 = vmatprep.subr.mxu0 0.0
        %1520 = vmatpush1.msra.mxu0 0.0
        %1521 = vmatprep.subr.mxu0 0.0
        %1522 = vmatpush1.msra.mxu0 0.0
        %1523 = vmatprep.subr.mxu0 0.0
        %1524 = vmatpush1.msra.mxu0 0.0
        %1525 = vmatprep.subr.mxu0 0.0
        %1526 = vmatpush1.msra.mxu0 0.0
        %1527 = vmatprep.subr.mxu0 0.0
        %1528 = vmatpush1.msra.mxu0 0.0
        %1529 = vmatprep.subr.mxu0 0.0
        %1530 = vmatpush1.msra.mxu0 0.0
        %1531 = vmatprep.subr.mxu0 0.0
        %1532 = vmatpush1.msra.mxu0 0.0
        %1533 = vmatprep.subr.mxu0 0.0
        %1534 = vmatpush1.msra.mxu0 0.0
        %1535 = vmatprep.subr.mxu0 0.0
        %1536 = vmatpush1.msra.mxu0 0.0
        %1537 = vmatprep.subr.mxu0 0.0
        %1538 = vmatpush1.msra.mxu0 0.0
        %1539 = vmatprep.subr.mxu0 0.0
        %1540 = vmatpush1.msra.mxu0 0.0
        %1541 = vmatprep.subr.mxu0 0.0
        %1542 = vmatpush1.msra.mxu0 0.0
        %1543 = vmatprep.mubr.f32.mxu0 0.0
        %1544 = vmatmul.mubr.f32.gmra.mrb[0].mxu0 %v1474
        %v1545 = vpop.f32.mrb[0].mxu0
        %v1546 = vadd.f32 0.0, %v1545
        %v1547 = vpop.f32.mrb[0].mxu0
        %1548 = vmatprep.mubr.f32.mxu0 0.0
        %1549 = vmatmul.mubr.f32.gmra.mrb[0].mxu0 %v1477
        %v1550 = vpop.f32.mrb[0].mxu0
        %v1551 = vadd.f32 0.0, %v1550
        %v1552 = vpop.f32.mrb[0].mxu0
        %1553 = vdwg.mxu0
        %s1554 = scalar_lea.vmem %s3, 24
        %v1555 = vld [vmem:[%s1554] sm:$0x7]
        %v1557 = vsel %vm612, %v1546, 0
        %v1560 = vsel %vm612, %v1551, 0
        %v1563 = vsel %vm619, %v1555, 0
        %1565 = vmatprep.subr.mxu0 0.0
        %1566 = vmatpush1.msra.mxu0 %v1563
        %1567 = vmatprep.subr.mxu0 0.0
        %1568 = vmatpush1.msra.mxu0 0.0
        %1569 = vmatprep.subr.mxu0 0.0
        %1570 = vmatpush1.msra.mxu0 0.0
        %1571 = vmatprep.subr.mxu0 0.0
        %1572 = vmatpush1.msra.mxu0 0.0
        %1573 = vmatprep.subr.mxu0 0.0
        %1574 = vmatpush1.msra.mxu0 0.0
        %1575 = vmatprep.subr.mxu0 0.0
        %1576 = vmatpush1.msra.mxu0 0.0
        %1577 = vmatprep.subr.mxu0 0.0
        %1578 = vmatpush1.msra.mxu0 0.0
        %1579 = vmatprep.subr.mxu0 0.0
        %1580 = vmatpush1.msra.mxu0 0.0
        %1581 = vmatprep.subr.mxu0 0.0
        %1582 = vmatpush1.msra.mxu0 0.0
        %1583 = vmatprep.subr.mxu0 0.0
        %1584 = vmatpush1.msra.mxu0 0.0
        %1585 = vmatprep.subr.mxu0 0.0
        %1586 = vmatpush1.msra.mxu0 0.0
        %1587 = vmatprep.subr.mxu0 0.0
        %1588 = vmatpush1.msra.mxu0 0.0
        %1589 = vmatprep.subr.mxu0 0.0
        %1590 = vmatpush1.msra.mxu0 0.0
        %1591 = vmatprep.subr.mxu0 0.0
        %1592 = vmatpush1.msra.mxu0 0.0
        %1593 = vmatprep.subr.mxu0 0.0
        %1594 = vmatpush1.msra.mxu0 0.0
        %1595 = vmatprep.subr.mxu0 0.0
        %1596 = vmatpush1.msra.mxu0 0.0
        %1597 = vmatprep.subr.mxu0 0.0
        %1598 = vmatpush1.msra.mxu0 0.0
        %1599 = vmatprep.subr.mxu0 0.0
        %1600 = vmatpush1.msra.mxu0 0.0
        %1601 = vmatprep.subr.mxu0 0.0
        %1602 = vmatpush1.msra.mxu0 0.0
        %1603 = vmatprep.subr.mxu0 0.0
        %1604 = vmatpush1.msra.mxu0 0.0
        %1605 = vmatprep.subr.mxu0 0.0
        %1606 = vmatpush1.msra.mxu0 0.0
        %1607 = vmatprep.subr.mxu0 0.0
        %1608 = vmatpush1.msra.mxu0 0.0
        %1609 = vmatprep.subr.mxu0 0.0
        %1610 = vmatpush1.msra.mxu0 0.0
        %1611 = vmatprep.subr.mxu0 0.0
        %1612 = vmatpush1.msra.mxu0 0.0
        %1613 = vmatprep.subr.mxu0 0.0
        %1614 = vmatpush1.msra.mxu0 0.0
        %1615 = vmatprep.subr.mxu0 0.0
        %1616 = vmatpush1.msra.mxu0 0.0
        %1617 = vmatprep.subr.mxu0 0.0
        %1618 = vmatpush1.msra.mxu0 0.0
        %1619 = vmatprep.subr.mxu0 0.0
        %1620 = vmatpush1.msra.mxu0 0.0
        %1621 = vmatprep.subr.mxu0 0.0
        %1622 = vmatpush1.msra.mxu0 0.0
        %1623 = vmatprep.subr.mxu0 0.0
        %1624 = vmatpush1.msra.mxu0 0.0
        %1625 = vmatprep.subr.mxu0 0.0
        %1626 = vmatpush1.msra.mxu0 0.0
        %1627 = vmatprep.subr.mxu0 0.0
        %1628 = vmatpush1.msra.mxu0 0.0
        %1629 = vmatprep.mubr.f32.mxu0 0.0
        %1630 = vmatmul.mubr.f32.gmra.mrb[0].mxu0 %v1557
        %v1631 = vpop.f32.mrb[0].mxu0
        %v1632 = vadd.f32 0.0, %v1631
        %v1633 = vpop.f32.mrb[0].mxu0
        %1634 = vmatprep.mubr.f32.mxu0 0.0
        %1635 = vmatmul.mubr.f32.gmra.mrb[0].mxu0 %v1560
        %v1636 = vpop.f32.mrb[0].mxu0
        %v1637 = vadd.f32 0.0, %v1636
        %v1638 = vpop.f32.mrb[0].mxu0
        %1639 = vdwg.mxu0
        %v1640 = vadd.f32 %v1468, %v1632
        %v1641 = vadd.f32 %v1469, %v1637
        %s1642 = scalar_lea.vmem %s5, 112
        %v1643 = vld [vmem:[%s1642] sm:$0xff]
        %v1644 = vld [vmem:[%s1642 + $0x8] sm:$0x1]
        %v1646 = vsel %vm440, %v1643, 0
        %v1649 = vsel %vm440, %v1644, 0
        %1651 = vmatprep.subr.mxu0 0.0
        %1652 = vmatpush1.msra.mxu0 %v427
        %1653 = vmatprep.subr.mxu0 0.0
        %1654 = vmatpush1.msra.mxu0 %v428
        %1655 = vmatprep.subr.mxu0 0.0
        %1656 = vmatpush1.msra.mxu0 %v429
        %1657 = vmatprep.subr.mxu0 0.0
        %1658 = vmatpush1.msra.mxu0 %v430
        %1659 = vmatprep.subr.mxu0 0.0
        %1660 = vmatpush1.msra.mxu0 %v431
        %1661 = vmatprep.subr.mxu0 0.0
        %1662 = vmatpush1.msra.mxu0 %v432
        %1663 = vmatprep.subr.mxu0 0.0
        %1664 = vmatpush1.msra.mxu0 %v433
        %1665 = vmatprep.subr.mxu0 0.0
        %1666 = vmatpush1.msra.mxu0 %v434
        %1667 = vmatprep.subr.mxu0 0.0
        %1668 = vmatpush1.msra.mxu0 %v435
        %1669 = vmatprep.subr.mxu0 0.0
        %1670 = vmatpush1.msra.mxu0 %v436
        %1671 = vmatprep.subr.mxu0 0.0
        %1672 = vmatpush1.msra.mxu0 %v448
        %1673 = vmatprep.subr.mxu0 0.0
        %1674 = vmatpush1.msra.mxu0 0.0
        %1675 = vmatprep.subr.mxu0 0.0
        %1676 = vmatpush1.msra.mxu0 0.0
        %1677 = vmatprep.subr.mxu0 0.0
        %1678 = vmatpush1.msra.mxu0 0.0
        %1679 = vmatprep.subr.mxu0 0.0
        %1680 = vmatpush1.msra.mxu0 0.0
        %1681 = vmatprep.subr.mxu0 0.0
        %1682 = vmatpush1.msra.mxu0 0.0
        %1683 = vmatprep.subr.mxu0 0.0
        %1684 = vmatpush1.msra.mxu0 0.0
        %1685 = vmatprep.subr.mxu0 0.0
        %1686 = vmatpush1.msra.mxu0 0.0
        %1687 = vmatprep.subr.mxu0 0.0
        %1688 = vmatpush1.msra.mxu0 0.0
        %1689 = vmatprep.subr.mxu0 0.0
        %1690 = vmatpush1.msra.mxu0 0.0
        %1691 = vmatprep.subr.mxu0 0.0
        %1692 = vmatpush1.msra.mxu0 0.0
        %1693 = vmatprep.subr.mxu0 0.0
        %1694 = vmatpush1.msra.mxu0 0.0
        %1695 = vmatprep.subr.mxu0 0.0
        %1696 = vmatpush1.msra.mxu0 0.0
        %1697 = vmatprep.subr.mxu0 0.0
        %1698 = vmatpush1.msra.mxu0 0.0
        %1699 = vmatprep.subr.mxu0 0.0
        %1700 = vmatpush1.msra.mxu0 0.0
        %1701 = vmatprep.subr.mxu0 0.0
        %1702 = vmatpush1.msra.mxu0 0.0
        %1703 = vmatprep.subr.mxu0 0.0
        %1704 = vmatpush1.msra.mxu0 0.0
        %1705 = vmatprep.subr.mxu0 0.0
        %1706 = vmatpush1.msra.mxu0 0.0
        %1707 = vmatprep.subr.mxu0 0.0
        %1708 = vmatpush1.msra.mxu0 0.0
        %1709 = vmatprep.subr.mxu0 0.0
        %1710 = vmatpush1.msra.mxu0 0.0
        %1711 = vmatprep.subr.mxu0 0.0
        %1712 = vmatpush1.msra.mxu0 0.0
        %1713 = vmatprep.subr.mxu0 0.0
        %1714 = vmatpush1.msra.mxu0 0.0
        %1715 = vmatprep.mubr.f32.mxu0 0.0
        %1716 = vmatmul.mubr.f32.gmra.mrb[0].mxu0 %v1646
        %v1717 = vpop.f32.mrb[0].mxu0
        %v1718 = vadd.f32 0.0, %v1717
        %v1719 = vpop.f32.mrb[0].mxu0
        %1720 = vmatprep.mubr.f32.mxu0 0.0
        %1721 = vmatmul.mubr.f32.gmra.mrb[0].mxu0 %v1649
        %v1722 = vpop.f32.mrb[0].mxu0
        %v1723 = vadd.f32 0.0, %v1722
        %v1724 = vpop.f32.mrb[0].mxu0
        %1725 = vdwg.mxu0
        %s1726 = scalar_lea.vmem %s3, 28
        %v1727 = vld [vmem:[%s1726] sm:$0x7]
        %v1729 = vsel %vm612, %v1718, 0
        %v1732 = vsel %vm612, %v1723, 0
        %v1735 = vsel %vm619, %v1727, 0
        %1737 = vmatprep.subr.mxu0 0.0
        %1738 = vmatpush1.msra.mxu0 %v1735
        %1739 = vmatprep.subr.mxu0 0.0
        %1740 = vmatpush1.msra.mxu0 0.0
        %1741 = vmatprep.subr.mxu0 0.0
        %1742 = vmatpush1.msra.mxu0 0.0
        %1743 = vmatprep.subr.mxu0 0.0
        %1744 = vmatpush1.msra.mxu0 0.0
        %1745 = vmatprep.subr.mxu0 0.0
        %1746 = vmatpush1.msra.mxu0 0.0
        %1747 = vmatprep.subr.mxu0 0.0
        %1748 = vmatpush1.msra.mxu0 0.0
        %1749 = vmatprep.subr.mxu0 0.0
        %1750 = vmatpush1.msra.mxu0 0.0
        %1751 = vmatprep.subr.mxu0 0.0
        %1752 = vmatpush1.msra.mxu0 0.0
        %1753 = vmatprep.subr.mxu0 0.0
        %1754 = vmatpush1.msra.mxu0 0.0
        %1755 = vmatprep.subr.mxu0 0.0
        %1756 = vmatpush1.msra.mxu0 0.0
        %1757 = vmatprep.subr.mxu0 0.0
        %1758 = vmatpush1.msra.mxu0 0.0
        %1759 = vmatprep.subr.mxu0 0.0
        %1760 = vmatpush1.msra.mxu0 0.0
        %1761 = vmatprep.subr.mxu0 0.0
        %1762 = vmatpush1.msra.mxu0 0.0
        %1763 = vmatprep.subr.mxu0 0.0
        %1764 = vmatpush1.msra.mxu0 0.0
        %1765 = vmatprep.subr.mxu0 0.0
        %1766 = vmatpush1.msra.mxu0 0.0
        %1767 = vmatprep.subr.mxu0 0.0
        %1768 = vmatpush1.msra.mxu0 0.0
        %1769 = vmatprep.subr.mxu0 0.0
        %1770 = vmatpush1.msra.mxu0 0.0
        %1771 = vmatprep.subr.mxu0 0.0
        %1772 = vmatpush1.msra.mxu0 0.0
        %1773 = vmatprep.subr.mxu0 0.0
        %1774 = vmatpush1.msra.mxu0 0.0
        %1775 = vmatprep.subr.mxu0 0.0
        %1776 = vmatpush1.msra.mxu0 0.0
        %1777 = vmatprep.subr.mxu0 0.0
        %1778 = vmatpush1.msra.mxu0 0.0
        %1779 = vmatprep.subr.mxu0 0.0
        %1780 = vmatpush1.msra.mxu0 0.0
        %1781 = vmatprep.subr.mxu0 0.0
        %1782 = vmatpush1.msra.mxu0 0.0
        %1783 = vmatprep.subr.mxu0 0.0
        %1784 = vmatpush1.msra.mxu0 0.0
        %1785 = vmatprep.subr.mxu0 0.0
        %1786 = vmatpush1.msra.mxu0 0.0
        %1787 = vmatprep.subr.mxu0 0.0
        %1788 = vmatpush1.msra.mxu0 0.0
        %1789 = vmatprep.subr.mxu0 0.0
        %1790 = vmatpush1.msra.mxu0 0.0
        %1791 = vmatprep.subr.mxu0 0.0
        %1792 = vmatpush1.msra.mxu0 0.0
        %1793 = vmatprep.subr.mxu0 0.0
        %1794 = vmatpush1.msra.mxu0 0.0
        %1795 = vmatprep.subr.mxu0 0.0
        %1796 = vmatpush1.msra.mxu0 0.0
        %1797 = vmatprep.subr.mxu0 0.0
        %1798 = vmatpush1.msra.mxu0 0.0
        %1799 = vmatprep.subr.mxu0 0.0
        %1800 = vmatpush1.msra.mxu0 0.0
        %1801 = vmatprep.mubr.f32.mxu0 0.0
        %1802 = vmatmul.mubr.f32.gmra.mrb[0].mxu0 %v1729
        %v1803 = vpop.f32.mrb[0].mxu0
        %v1804 = vadd.f32 0.0, %v1803
        %v1805 = vpop.f32.mrb[0].mxu0
        %1806 = vmatprep.mubr.f32.mxu0 0.0
        %1807 = vmatmul.mubr.f32.gmra.mrb[0].mxu0 %v1732
        %v1808 = vpop.f32.mrb[0].mxu0
        %v1809 = vadd.f32 0.0, %v1808
        %v1810 = vpop.f32.mrb[0].mxu0
        %1811 = vdwg.mxu0
        %v1812 = vadd.f32 %v1640, %v1804
        %v1813 = vadd.f32 %v1641, %v1809
        %s1814 = scalar_lea.vmem %s5, 128
        %v1815 = vld [vmem:[%s1814] sm:$0xff]
        %v1816 = vld [vmem:[%s1814 + $0x8] sm:$0x1]
        %v1818 = vsel %vm440, %v1815, 0
        %v1821 = vsel %vm440, %v1816, 0
        %1823 = vmatprep.subr.mxu0 0.0
        %1824 = vmatpush1.msra.mxu0 %v427
        %1825 = vmatprep.subr.mxu0 0.0
        %1826 = vmatpush1.msra.mxu0 %v428
        %1827 = vmatprep.subr.mxu0 0.0
        %1828 = vmatpush1.msra.mxu0 %v429
        %1829 = vmatprep.subr.mxu0 0.0
        %1830 = vmatpush1.msra.mxu0 %v430
        %1831 = vmatprep.subr.mxu0 0.0
        %1832 = vmatpush1.msra.mxu0 %v431
        %1833 = vmatprep.subr.mxu0 0.0
        %1834 = vmatpush1.msra.mxu0 %v432
        %1835 = vmatprep.subr.mxu0 0.0
        %1836 = vmatpush1.msra.mxu0 %v433
        %1837 = vmatprep.subr.mxu0 0.0
        %1838 = vmatpush1.msra.mxu0 %v434
        %1839 = vmatprep.subr.mxu0 0.0
        %1840 = vmatpush1.msra.mxu0 %v435
        %1841 = vmatprep.subr.mxu0 0.0
        %1842 = vmatpush1.msra.mxu0 %v436
        %1843 = vmatprep.subr.mxu0 0.0
        %1844 = vmatpush1.msra.mxu0 %v448
        %1845 = vmatprep.subr.mxu0 0.0
        %1846 = vmatpush1.msra.mxu0 0.0
        %1847 = vmatprep.subr.mxu0 0.0
        %1848 = vmatpush1.msra.mxu0 0.0
        %1849 = vmatprep.subr.mxu0 0.0
        %1850 = vmatpush1.msra.mxu0 0.0
        %1851 = vmatprep.subr.mxu0 0.0
        %1852 = vmatpush1.msra.mxu0 0.0
        %1853 = vmatprep.subr.mxu0 0.0
        %1854 = vmatpush1.msra.mxu0 0.0
        %1855 = vmatprep.subr.mxu0 0.0
        %1856 = vmatpush1.msra.mxu0 0.0
        %1857 = vmatprep.subr.mxu0 0.0
        %1858 = vmatpush1.msra.mxu0 0.0
        %1859 = vmatprep.subr.mxu0 0.0
        %1860 = vmatpush1.msra.mxu0 0.0
        %1861 = vmatprep.subr.mxu0 0.0
        %1862 = vmatpush1.msra.mxu0 0.0
        %1863 = vmatprep.subr.mxu0 0.0
        %1864 = vmatpush1.msra.mxu0 0.0
        %1865 = vmatprep.subr.mxu0 0.0
        %1866 = vmatpush1.msra.mxu0 0.0
        %1867 = vmatprep.subr.mxu0 0.0
        %1868 = vmatpush1.msra.mxu0 0.0
        %1869 = vmatprep.subr.mxu0 0.0
        %1870 = vmatpush1.msra.mxu0 0.0
        %1871 = vmatprep.subr.mxu0 0.0
        %1872 = vmatpush1.msra.mxu0 0.0
        %1873 = vmatprep.subr.mxu0 0.0
        %1874 = vmatpush1.msra.mxu0 0.0
        %1875 = vmatprep.subr.mxu0 0.0
        %1876 = vmatpush1.msra.mxu0 0.0
        %1877 = vmatprep.subr.mxu0 0.0
        %1878 = vmatpush1.msra.mxu0 0.0
        %1879 = vmatprep.subr.mxu0 0.0
        %1880 = vmatpush1.msra.mxu0 0.0
        %1881 = vmatprep.subr.mxu0 0.0
        %1882 = vmatpush1.msra.mxu0 0.0
        %1883 = vmatprep.subr.mxu0 0.0
        %1884 = vmatpush1.msra.mxu0 0.0
        %1885 = vmatprep.subr.mxu0 0.0
        %1886 = vmatpush1.msra.mxu0 0.0
        %1887 = vmatprep.mubr.f32.mxu0 0.0
        %1888 = vmatmul.mubr.f32.gmra.mrb[0].mxu0 %v1818
        %v1889 = vpop.f32.mrb[0].mxu0
        %v1890 = vadd.f32 0.0, %v1889
        %v1891 = vpop.f32.mrb[0].mxu0
        %1892 = vmatprep.mubr.f32.mxu0 0.0
        %1893 = vmatmul.mubr.f32.gmra.mrb[0].mxu0 %v1821
        %v1894 = vpop.f32.mrb[0].mxu0
        %v1895 = vadd.f32 0.0, %v1894
        %v1896 = vpop.f32.mrb[0].mxu0
        %1897 = vdwg.mxu0
        %s1898 = scalar_lea.vmem %s3, 32
        %v1899 = vld [vmem:[%s1898] sm:$0x7]
        %v1901 = vsel %vm612, %v1890, 0
        %v1904 = vsel %vm612, %v1895, 0
        %v1907 = vsel %vm619, %v1899, 0
        %1909 = vmatprep.subr.mxu0 0.0
        %1910 = vmatpush1.msra.mxu0 %v1907
        %1911 = vmatprep.subr.mxu0 0.0
        %1912 = vmatpush1.msra.mxu0 0.0
        %1913 = vmatprep.subr.mxu0 0.0
        %1914 = vmatpush1.msra.mxu0 0.0
        %1915 = vmatprep.subr.mxu0 0.0
        %1916 = vmatpush1.msra.mxu0 0.0
        %1917 = vmatprep.subr.mxu0 0.0
        %1918 = vmatpush1.msra.mxu0 0.0
        %1919 = vmatprep.subr.mxu0 0.0
        %1920 = vmatpush1.msra.mxu0 0.0
        %1921 = vmatprep.subr.mxu0 0.0
        %1922 = vmatpush1.msra.mxu0 0.0
        %1923 = vmatprep.subr.mxu0 0.0
        %1924 = vmatpush1.msra.mxu0 0.0
        %1925 = vmatprep.subr.mxu0 0.0
        %1926 = vmatpush1.msra.mxu0 0.0
        %1927 = vmatprep.subr.mxu0 0.0
        %1928 = vmatpush1.msra.mxu0 0.0
        %1929 = vmatprep.subr.mxu0 0.0
        %1930 = vmatpush1.msra.mxu0 0.0
        %1931 = vmatprep.subr.mxu0 0.0
        %1932 = vmatpush1.msra.mxu0 0.0
        %1933 = vmatprep.subr.mxu0 0.0
        %1934 = vmatpush1.msra.mxu0 0.0
        %1935 = vmatprep.subr.mxu0 0.0
        %1936 = vmatpush1.msra.mxu0 0.0
        %1937 = vmatprep.subr.mxu0 0.0
        %1938 = vmatpush1.msra.mxu0 0.0
        %1939 = vmatprep.subr.mxu0 0.0
        %1940 = vmatpush1.msra.mxu0 0.0
        %1941 = vmatprep.subr.mxu0 0.0
        %1942 = vmatpush1.msra.mxu0 0.0
        %1943 = vmatprep.subr.mxu0 0.0
        %1944 = vmatpush1.msra.mxu0 0.0
        %1945 = vmatprep.subr.mxu0 0.0
        %1946 = vmatpush1.msra.mxu0 0.0
        %1947 = vmatprep.subr.mxu0 0.0
        %1948 = vmatpush1.msra.mxu0 0.0
        %1949 = vmatprep.subr.mxu0 0.0
        %1950 = vmatpush1.msra.mxu0 0.0
        %1951 = vmatprep.subr.mxu0 0.0
        %1952 = vmatpush1.msra.mxu0 0.0
        %1953 = vmatprep.subr.mxu0 0.0
        %1954 = vmatpush1.msra.mxu0 0.0
        %1955 = vmatprep.subr.mxu0 0.0
        %1956 = vmatpush1.msra.mxu0 0.0
        %1957 = vmatprep.subr.mxu0 0.0
        %1958 = vmatpush1.msra.mxu0 0.0
        %1959 = vmatprep.subr.mxu0 0.0
        %1960 = vmatpush1.msra.mxu0 0.0
        %1961 = vmatprep.subr.mxu0 0.0
        %1962 = vmatpush1.msra.mxu0 0.0
        %1963 = vmatprep.subr.mxu0 0.0
        %1964 = vmatpush1.msra.mxu0 0.0
        %1965 = vmatprep.subr.mxu0 0.0
        %1966 = vmatpush1.msra.mxu0 0.0
        %1967 = vmatprep.subr.mxu0 0.0
        %1968 = vmatpush1.msra.mxu0 0.0
        %1969 = vmatprep.subr.mxu0 0.0
        %1970 = vmatpush1.msra.mxu0 0.0
        %1971 = vmatprep.subr.mxu0 0.0
        %1972 = vmatpush1.msra.mxu0 0.0
        %1973 = vmatprep.mubr.f32.mxu0 0.0
        %1974 = vmatmul.mubr.f32.gmra.mrb[0].mxu0 %v1901
        %v1975 = vpop.f32.mrb[0].mxu0
        %v1976 = vadd.f32 0.0, %v1975
        %v1977 = vpop.f32.mrb[0].mxu0
        %1978 = vmatprep.mubr.f32.mxu0 0.0
        %1979 = vmatmul.mubr.f32.gmra.mrb[0].mxu0 %v1904
        %v1980 = vpop.f32.mrb[0].mxu0
        %v1981 = vadd.f32 0.0, %v1980
        %v1982 = vpop.f32.mrb[0].mxu0
        %1983 = vdwg.mxu0
        %v1984 = vadd.f32 %v1812, %v1976
        %v1985 = vadd.f32 %v1813, %v1981
        %v1986 = vld [vmem:[%s4] sm:$0x1]
        %v1988 = vlaneseq
        %v1989 = vshrl.u32 %v1988, 7
        %v1990 = vsub.s32 0, %v1989
        %v1991 = vrot.slane %v1986, %v1990
        %v1993 = vadd.f32 %v1984, %v1991
        %v1994 = vadd.f32 %v1985, %v1991
        %v1995 = vmax.f32 %v1993, 0.0
        %v1996 = vmax.f32 %v1994, 0.0
        %v1997 = vsel %vm612, %v1995, -inf
        %vm1998 = vcmask 16384
        %v1999 = vsel %vm1998, %v1996, -inf
        %v2000 = vmax.f32 %v1997, %v1999
        %v2001 = vrot.slane %v2000, 4
        %v2002 = vmax.f32 %v2000, %v2001
        %v2003 = vrot.slane %v2002, 2
        %v2004 = vmax.f32 %v2002, %v2003
        %v2005 = vrot.slane %v2004, 1
        %v2006 = vmax.f32 %v2004, %v2005
        %2007 = vst.msk [vmem:[%s243] sm:$0x1] %vm1998, %v2006
        %s2008 = sand.u32 %s159, 1
        %s2009 = scalar_lea.sflag [#allocation3], %s2008
        %s2010 = sand.u32 %s159, 1
        %s2011 = scalar_lea.vmem [#allocation2], %s2010
        // Predicated region
        $region45: #{forward.1} parent=43 // pred_check
          %p2012 = pneg %p169
        $region46: #{forward.1} parent=43 // pred_check_branch
          %2014 = sbr.rel (%p2012) target = $region48
        $region47: #{forward.1} parent=43 // pred_region
          %s2016 = ssub.s32 16, 16
          %2017 = vsyncadd %s2009, %s2016
          %s2018 = smul.addr %s20, 16
          %s2019 = scalar_lea.hbm %s6, %s2018
          %s2021 = sshll.u32 %s2011, 4
          %s2022 = int_to_ptr.vmem [resolvable:$true] %s2021
          %2024 = dma.vmem_to_hbm [thread:$0]  %s2022, 16, %s2019, %s2009
        $region48: #{forward.1} parent=43 // pred_fallthru
          _
      $region44: #{forward.1} parent=5 // pred_fallthru
        _
      %p2025 = scmp.le.s32.totalorder 2, %s15
      // Predicated region
      $region49: #{forward.1} parent=5 // pred_check
        %p2026 = pneg %p2025
      $region50: #{forward.1} parent=5 // pred_check_branch
        %2028 = sbr.rel (%p2026) target = $region52
      $region51: #{forward.1} parent=5 // pred_region
        %s2029 = ssub.s32 %s15, 2
        // Predicated region
        $region53: #{forward.1} parent=51 // pred_check
          %p2030 = pneg %p175
        $region54: #{forward.1} parent=51 // pred_check_branch
          %2032 = sbr.rel (%p2030) target = $region56
        $region55: #{forward.1} parent=51 // pred_region
          %s2033 = sand.u32 %s160, 1
          %s2034 = scalar_lea.sflag [#allocation3], %s2033
          %s2035 = sand.u32 %s160, 1
          %s2036 = scalar_lea.vmem [#allocation2], %s2035
          %2037 = dma.done %s2034, 16
        $region56: #{forward.1} parent=51 // pred_fallthru
          _
      $region52: #{forward.1} parent=5 // pred_fallthru
        _
    $region6: #{forward.1} parent=1 // loop_footer
      %s19 = sadd.s32 1, %s15
    $region7: #{forward.1} parent=1 // loop_footer_branch
      %14 = sbr.rel target = $region3
    $region8: #{forward.1} parent=1 // loop_exit
      _
    %2038 = vsyncpa [#allocation3], 1
    %s2039 = scalar_lea.sflag [#allocation3], 1
    %2040 = vsyncpa %s2039, 1

</llo_original>
